<compile_context>
chip_gen: v6e
topology: v6e:2x2x1
jax: 0.10.0
libtpu: 0.0.40
codegen_flags: <defaults>
</compile_context>

<pallas_src>
import math
import jax
import jax.numpy as jnp
from jax.experimental import pallas as pl
from jax.experimental.pallas import tpu as pltpu


def _round_up(x, m):
    return ((x + m - 1) // m) * m


def _chip_config():
    """Per-generation knobs (v7x: 64 MiB VMEM + 2 TCs; v5e: no bf16 VPU)."""
    try:
        kind = jax.devices()[0].device_kind.lower()
    except Exception:
        kind = ""
    is_v7 = ("v7" in kind) or ("7x" in kind)
    is_v6 = "v6" in kind
    vmem_cap = (64 << 20) if is_v7 else (100 << 20)   # don't clamp 128 MiB parts at 64 MiB
    num_cores = 2 if is_v7 else 1                      # v7x has 2 TensorCores per chip
    # bf16 bias+ReLU epilogue only where the VPU speaks bf16 (v6e/v7x);
    # v5e and older/unknown chips keep the f32 epilogue.
    epilogue_dtype = jnp.bfloat16 if (is_v6 or is_v7) else jnp.float32
    tm_cap = 256                                       # MXU-filling batch tile
    return tm_cap, vmem_cap, num_cores, epilogue_dtype


def _choose_tm(batch, cap, num_cores):
    """Pick the batch tile: as large as possible, divisor-friendly (avoids a
    whole-array host pad), and >=2 grid steps when 2 TensorCores exist."""
    b8 = _round_up(max(batch, 1), 8)
    if b8 <= cap:
        if num_cores > 1 and b8 >= 16:
            # Split a single-tile batch so both v7x TensorCores get work.
            half = _round_up((b8 + num_cores - 1) // num_cores, 8)
            if half < b8:
                return half
        return b8
    for tm in range(cap, 7, -8):    # largest tile that divides the batch
        if b8 % tm == 0:
            return tm
    return cap


def _make_expert_kernel(epilogue_dtype):
    def expert_kernel(x_ref, w1_ref, b1_ref, w2_ref, b2_ref,
                      w3_ref, b3_ref, w4_ref, b4_ref, o_ref):
        """Fused 4x(Linear+ReLU) for one [tm, in] batch tile.

        bf16 MXU feeds with f32 accumulation; bias + ReLU in `epilogue_dtype`
        (bf16 on v6e/v7x, f32 on v5e).
        """
        def layer(h, w_ref, b_ref):
            acc = jnp.dot(h.astype(jnp.bfloat16), w_ref[...],
                          preferred_element_type=jnp.float32)
            acc = acc.astype(epilogue_dtype) + b_ref[...].astype(epilogue_dtype)
            return jnp.maximum(acc, 0.0)

        h = layer(x_ref[...], w1_ref, b1_ref)
        h = layer(h, w2_ref, b2_ref)
        h = layer(h, w3_ref, b3_ref)
        h = layer(h, w4_ref, b4_ref)
        o_ref[...] = h.astype(o_ref.dtype)

    return expert_kernel


def expert_forward(x, params, *, tm=None):
    """x: [B, input_size] (any float dtype; streamed as bf16).

    params: w1..w4 as [in, out] bf16, b1..b4 as [1, out] f32.
    Returns bf16 [B, output_size].
    """
    B, in_size = x.shape
    hid = params["w1"].shape[1]
    out_size = params["w4"].shape[1]

    tm_cap, vmem_cap, num_cores, epilogue_dtype = _chip_config()
    if tm is None:
        tm = _choose_tm(B, tm_cap, num_cores)
    Bp = _round_up(B, tm)

    # bf16 activations in/out: with weights VMEM-resident the steady-state HBM
    # traffic is just the x / out tiles, so halving their bytes ~halves step time.
    x = x.astype(jnp.bfloat16)
    if Bp != B:
        x = jnp.pad(x, ((0, Bp - B), (0, 0)))
    grid = (Bp // tm,)

    param_bytes = sum(int(v.size) * v.dtype.itemsize for v in params.values())
    max_dim = max(in_size, hid, out_size)

    # Explicit VMEM budget (upper bound assumes double-buffered weights so the
    # single-buffer path below always fits as well).
    tile_bytes = 2 * tm * in_size * 2 + 2 * tm * out_size * 2      # bf16 x/out, 2-deep
    act_bytes = 2 * tm * max_dim * 4                               # live intermediates
    need = tile_bytes + 2 * param_bytes + act_bytes + (4 << 20)    # + headroom
    if need > vmem_cap:
        # TODO(synk): per-layer output-feature tiling fallback when the
        # resident-weight design stops fitting (mainly v7x's 64 MiB VMEM).
        raise ValueError(
            f"Expert needs ~{need >> 20} MiB VMEM, over the {vmem_cap >> 20} MiB "
            f"budget for this chip; reduce hidden_size or tile the layers.")
    vmem_limit = int(min(max(need, 16 << 20), vmem_cap))

    # Advisory cost for XLA's scheduler (padded sizes used consistently).
    flops = 2 * Bp * (in_size * hid + 2 * hid * hid + hid * out_size)
    bytes_accessed = Bp * in_size * 2 + param_bytes + Bp * out_size * 2
    cost = pl.CostEstimate(flops=flops, transcendentals=0,
                           bytes_accessed=bytes_accessed)

    kernel = _make_expert_kernel(epilogue_dtype)
    flat = (x, params["w1"], params["b1"], params["w2"], params["b2"],
            params["w3"], params["b3"], params["w4"], params["b4"])

    def build(single_buffer_weights):
        extra = {"pipeline_mode": pl.Buffered(1)} if single_buffer_weights else {}

        def w_spec(shape):
            # Grid-invariant block: same (0, 0) every step.
            return pl.BlockSpec(shape, lambda i: (0, 0), **extra)

        return pl.pallas_call(
            kernel,
            out_shape=jax.ShapeDtypeStruct((Bp, out_size), jnp.bfloat16),
            grid_spec=pltpu.PrefetchScalarGridSpec(
                num_scalar_prefetch=0,
                grid=grid,
                in_specs=[
                    pl.BlockSpec((tm, in_size), lambda i: (i, 0)),   # x tile
                    w_spec((in_size, hid)),  w_spec((1, hid)),       # layer 1
                    w_spec((hid, hid)),      w_spec((1, hid)),       # layer 2
                    w_spec((hid, hid)),      w_spec((1, hid)),       # layer 3
                    w_spec((hid, out_size)), w_spec((1, out_size)),  # layer 4
                ],
                out_specs=pl.BlockSpec((tm, out_size), lambda i: (i, 0)),
            ),
            compiler_params=pltpu.CompilerParams(
                dimension_semantics=("parallel",),
                vmem_limit_bytes=vmem_limit),
            cost_estimate=cost,
        )

    try:
        # Single-buffer the grid-invariant weight/bias blocks (halves their
        # VMEM residency; pipelining an invariant block buys nothing).
        out = build(True)(*flat)
    except Exception:
        out = build(False)(*flat)   # fallback if Buffered(1) is unsupported

    return out[:B]


def init_expert_params(key, input_size, hidden_size, output_size):
    """PyTorch-style (Kaiming-uniform-ish) init; weights [in, out] bf16, biases f32."""
    dims = [(input_size, hidden_size),
            (hidden_size, hidden_size),
            (hidden_size, hidden_size),
            (hidden_size, output_size)]
    params = {}
    for idx, (fan_in, fan_out) in enumerate(dims, start=1):
        key, kw, kb = jax.random.split(key, 3)
        bound = 1.0 / math.sqrt(fan_in)
        w = jax.random.uniform(kw, (fan_in, fan_out), jnp.float32, -bound, bound)
        b = jax.random.uniform(kb, (1, fan_out), jnp.float32, -bound, bound)
        params[f"w{idx}"] = w.astype(jnp.bfloat16)   # half-size DMAs, MXU-native
        params[f"b{idx}"] = b                        # init kept in f32
    return params


def expert_reference_matched(x, p, epilogue_dtype):
    """Matches kernel arithmetic exactly: bf16 matmul inputs, f32 accumulation,
    `epilogue_dtype` bias+ReLU, bf16 output."""
    h = x.astype(jnp.bfloat16)
    for i in range(1, 5):
        acc = jnp.dot(h.astype(jnp.bfloat16), p[f"w{i}"],
                      preferred_element_type=jnp.float32)
        h = jnp.maximum(acc.astype(epilogue_dtype)
                        + p[f"b{i}"].astype(epilogue_dtype), 0.0)
    return h.astype(jnp.bfloat16)


def expert_reference_f32(x, p):
    """Full-f32 reference using the same (bf16-stored) weight values."""
    h = x
    for i in range(1, 5):
        h = jnp.maximum(h @ p[f"w{i}"].astype(jnp.float32) + p[f"b{i}"], 0.0)
    return h


if __name__ == "__main__":
    # Small shapes consistent with Expert(input_size, hidden_size, output_size).
    batch, input_size, hidden_size, output_size = 20, 256, 128, 256

    key = jax.random.PRNGKey(0)
    key, kx = jax.random.split(key)
    x = jax.random.normal(kx, (batch, input_size), jnp.float32)
    params = init_expert_params(key, input_size, hidden_size, output_size)

    out = jax.block_until_ready(expert_forward(x, params))
    assert out.shape == (batch, output_size)
    assert out.dtype == jnp.bfloat16

    _, _, _, ep_dtype = _chip_config()
    ref = expert_reference_matched(x, params, ep_dtype)
    err = float(jnp.max(jnp.abs(out.astype(jnp.float32) - ref.astype(jnp.float32))))
    assert err < 2e-2, err

    ref32 = expert_reference_f32(x, params)
    assert jnp.allclose(out.astype(jnp.float32), ref32, atol=6e-2, rtol=6e-2), \
        float(jnp.max(jnp.abs(out.astype(jnp.float32) - ref32)))

    print("KERNEL_OK")
</pallas_src>

<mosaic_0001>
module attributes {stable_mosaic.version = 11 : i64} {
  func.func @expert_kernel(%arg0: i32, %arg1: memref<24x256xbf16, #tpu.memory_space<vmem>>, %arg2: memref<256x128xbf16, #tpu.memory_space<vmem>>, %arg3: memref<1x128xf32, #tpu.memory_space<vmem>>, %arg4: memref<128x128xbf16, #tpu.memory_space<vmem>>, %arg5: memref<1x128xf32, #tpu.memory_space<vmem>>, %arg6: memref<128x128xbf16, #tpu.memory_space<vmem>>, %arg7: memref<1x128xf32, #tpu.memory_space<vmem>>, %arg8: memref<128x256xbf16, #tpu.memory_space<vmem>>, %arg9: memref<1x256xf32, #tpu.memory_space<vmem>>, %arg10: memref<24x256xbf16, #tpu.memory_space<vmem>>) attributes {dimension_semantics = [#tpu.dimension_semantics<parallel>], iteration_bounds = array<i64: 1>, scalar_prefetch = 0 : i64, scratch_operands = 0 : i64, tpu.core_type = #tpu.core_type<tc>, window_params = [{transform_indices = @transform_0, window_bounds = array<i64: 24, 256>}, {pipeline_mode = #tpu.pipeline_mode<synchronous>, transform_indices = @transform_1, window_bounds = array<i64: 256, 128>}, {pipeline_mode = #tpu.pipeline_mode<synchronous>, transform_indices = @transform_2, window_bounds = array<i64: 1, 128>}, {pipeline_mode = #tpu.pipeline_mode<synchronous>, transform_indices = @transform_3, window_bounds = array<i64: 128, 128>}, {pipeline_mode = #tpu.pipeline_mode<synchronous>, transform_indices = @transform_4, window_bounds = array<i64: 1, 128>}, {pipeline_mode = #tpu.pipeline_mode<synchronous>, transform_indices = @transform_5, window_bounds = array<i64: 128, 128>}, {pipeline_mode = #tpu.pipeline_mode<synchronous>, transform_indices = @transform_6, window_bounds = array<i64: 1, 128>}, {pipeline_mode = #tpu.pipeline_mode<synchronous>, transform_indices = @transform_7, window_bounds = array<i64: 128, 256>}, {pipeline_mode = #tpu.pipeline_mode<synchronous>, transform_indices = @transform_8, window_bounds = array<i64: 1, 256>}, {transform_indices = @transform_9, window_bounds = array<i64: 24, 256>}]} {
    %c0 = arith.constant 0 : index
    %c0_0 = arith.constant 0 : index
    %0 = vector.load %arg1[%c0, %c0_0] : memref<24x256xbf16, #tpu.memory_space<vmem>>, vector<24x256xbf16>
    %c0_1 = arith.constant 0 : index
    %c0_2 = arith.constant 0 : index
    %1 = vector.load %arg2[%c0_1, %c0_2] : memref<256x128xbf16, #tpu.memory_space<vmem>>, vector<256x128xbf16>
    %cst = arith.constant dense<0.000000e+00> : vector<24x128xf32>
    %2 = tpu.matmul %0, %1, %cst {dimension_numbers = #tpu.dot_dimension_numbers<[1], [0], [0], [1], [0, 0, 1, 1], [], []>} : vector<24x256xbf16>, vector<256x128xbf16>, vector<24x128xf32> -> vector<24x128xf32>
    %c0_3 = arith.constant 0 : index
    %c0_4 = arith.constant 0 : index
    %3 = vector.load %arg3[%c0_3, %c0_4] : memref<1x128xf32, #tpu.memory_space<vmem>>, vector<1x128xf32>
    %4 = vector.broadcast %3 : vector<1x128xf32> to vector<24x128xf32>
    %5 = arith.addf %2, %4 : vector<24x128xf32>
    %cst_5 = arith.constant 0.000000e+00 : f32
    %6 = vector.broadcast %cst_5 : f32 to vector<24x128xf32>
    %7 = arith.maximumf %5, %6 : vector<24x128xf32>
    %8 = arith.truncf %7 : vector<24x128xf32> to vector<24x128xbf16>
    %c0_6 = arith.constant 0 : index
    %c0_7 = arith.constant 0 : index
    %9 = vector.load %arg4[%c0_6, %c0_7] : memref<128x128xbf16, #tpu.memory_space<vmem>>, vector<128x128xbf16>
    %cst_8 = arith.constant dense<0.000000e+00> : vector<24x128xf32>
    %10 = tpu.matmul %8, %9, %cst_8 {dimension_numbers = #tpu.dot_dimension_numbers<[1], [0], [0], [1], [0, 0, 1, 1], [], []>} : vector<24x128xbf16>, vector<128x128xbf16>, vector<24x128xf32> -> vector<24x128xf32>
    %c0_9 = arith.constant 0 : index
    %c0_10 = arith.constant 0 : index
    %11 = vector.load %arg5[%c0_9, %c0_10] : memref<1x128xf32, #tpu.memory_space<vmem>>, vector<1x128xf32>
    %12 = vector.broadcast %11 : vector<1x128xf32> to vector<24x128xf32>
    %13 = arith.addf %10, %12 : vector<24x128xf32>
    %cst_11 = arith.constant 0.000000e+00 : f32
    %14 = vector.broadcast %cst_11 : f32 to vector<24x128xf32>
    %15 = arith.maximumf %13, %14 : vector<24x128xf32>
    %16 = arith.truncf %15 : vector<24x128xf32> to vector<24x128xbf16>
    %c0_12 = arith.constant 0 : index
    %c0_13 = arith.constant 0 : index
    %17 = vector.load %arg6[%c0_12, %c0_13] : memref<128x128xbf16, #tpu.memory_space<vmem>>, vector<128x128xbf16>
    %cst_14 = arith.constant dense<0.000000e+00> : vector<24x128xf32>
    %18 = tpu.matmul %16, %17, %cst_14 {dimension_numbers = #tpu.dot_dimension_numbers<[1], [0], [0], [1], [0, 0, 1, 1], [], []>} : vector<24x128xbf16>, vector<128x128xbf16>, vector<24x128xf32> -> vector<24x128xf32>
    %c0_15 = arith.constant 0 : index
    %c0_16 = arith.constant 0 : index
    %19 = vector.load %arg7[%c0_15, %c0_16] : memref<1x128xf32, #tpu.memory_space<vmem>>, vector<1x128xf32>
    %20 = vector.broadcast %19 : vector<1x128xf32> to vector<24x128xf32>
    %21 = arith.addf %18, %20 : vector<24x128xf32>
    %cst_17 = arith.constant 0.000000e+00 : f32
    %22 = vector.broadcast %cst_17 : f32 to vector<24x128xf32>
    %23 = arith.maximumf %21, %22 : vector<24x128xf32>
    %24 = arith.truncf %23 : vector<24x128xf32> to vector<24x128xbf16>
    %c0_18 = arith.constant 0 : index
    %c0_19 = arith.constant 0 : index
    %25 = vector.load %arg8[%c0_18, %c0_19] : memref<128x256xbf16, #tpu.memory_space<vmem>>, vector<128x256xbf16>
    %cst_20 = arith.constant dense<0.000000e+00> : vector<24x256xf32>
    %26 = tpu.matmul %24, %25, %cst_20 {dimension_numbers = #tpu.dot_dimension_numbers<[1], [0], [0], [1], [0, 0, 1, 1], [], []>} : vector<24x128xbf16>, vector<128x256xbf16>, vector<24x256xf32> -> vector<24x256xf32>
    %c0_21 = arith.constant 0 : index
    %c0_22 = arith.constant 0 : index
    %27 = vector.load %arg9[%c0_21, %c0_22] : memref<1x256xf32, #tpu.memory_space<vmem>>, vector<1x256xf32>
    %28 = vector.broadcast %27 : vector<1x256xf32> to vector<24x256xf32>
    %29 = arith.addf %26, %28 : vector<24x256xf32>
    %cst_23 = arith.constant 0.000000e+00 : f32
    %30 = vector.broadcast %cst_23 : f32 to vector<24x256xf32>
    %31 = arith.maximumf %29, %30 : vector<24x256xf32>
    %32 = arith.truncf %31 : vector<24x256xf32> to vector<24x256xbf16>
    %c0_24 = arith.constant 0 : index
    %c0_25 = arith.constant 0 : index
    %33 = vector.load %arg10[%c0_24, %c0_25] : memref<24x256xbf16, #tpu.memory_space<vmem>>, vector<24x256xbf16>
    tpu.vector_store %arg10[%c0_24, %c0_25], %32 {strides = array<i32>} : memref<24x256xbf16, #tpu.memory_space<vmem>>, vector<24x256xbf16>,
    return
  }
  func.func @transform_0(%arg0: i32) -> (i32, i32) {
    %c0_i32 = arith.constant 0 : i32
    %c0_i32_0 = arith.constant 0 : i32
    return %arg0, %c0_i32 : i32, i32
  }
  func.func @transform_1(%arg0: i32) -> (i32, i32) {
    %c0_i32 = arith.constant 0 : i32
    %c0_i32_0 = arith.constant 0 : i32
    %c0_i32_1 = arith.constant 0 : i32
    return %c0_i32, %c0_i32_0 : i32, i32
  }
  func.func @transform_2(%arg0: i32) -> (i32, i32) {
    %c0_i32 = arith.constant 0 : i32
    %c0_i32_0 = arith.constant 0 : i32
    %c0_i32_1 = arith.constant 0 : i32
    return %c0_i32, %c0_i32_0 : i32, i32
  }
  func.func @transform_3(%arg0: i32) -> (i32, i32) {
    %c0_i32 = arith.constant 0 : i32
    %c0_i32_0 = arith.constant 0 : i32
    %c0_i32_1 = arith.constant 0 : i32
    return %c0_i32, %c0_i32_0 : i32, i32
  }
  func.func @transform_4(%arg0: i32) -> (i32, i32) {
    %c0_i32 = arith.constant 0 : i32
    %c0_i32_0 = arith.constant 0 : i32
    %c0_i32_1 = arith.constant 0 : i32
    return %c0_i32, %c0_i32_0 : i32, i32
  }
  func.func @transform_5(%arg0: i32) -> (i32, i32) {
    %c0_i32 = arith.constant 0 : i32
    %c0_i32_0 = arith.constant 0 : i32
    %c0_i32_1 = arith.constant 0 : i32
    return %c0_i32, %c0_i32_0 : i32, i32
  }
  func.func @transform_6(%arg0: i32) -> (i32, i32) {
    %c0_i32 = arith.constant 0 : i32
    %c0_i32_0 = arith.constant 0 : i32
    %c0_i32_1 = arith.constant 0 : i32
    return %c0_i32, %c0_i32_0 : i32, i32
  }
  func.func @transform_7(%arg0: i32) -> (i32, i32) {
    %c0_i32 = arith.constant 0 : i32
    %c0_i32_0 = arith.constant 0 : i32
    %c0_i32_1 = arith.constant 0 : i32
    return %c0_i32, %c0_i32_0 : i32, i32
  }
  func.func @transform_8(%arg0: i32) -> (i32, i32) {
    %c0_i32 = arith.constant 0 : i32
    %c0_i32_0 = arith.constant 0 : i32
    %c0_i32_1 = arith.constant 0 : i32
    return %c0_i32, %c0_i32_0 : i32, i32
  }
  func.func @transform_9(%arg0: i32) -> (i32, i32) {
    %c0_i32 = arith.constant 0 : i32
    %c0_i32_0 = arith.constant 0 : i32
    return %arg0, %c0_i32 : i32, i32
  }
}

module attributes {stable_mosaic.version = 11 : i64} {
  func.func @expert_kernel(%arg0: i32, %arg1: memref<24x256xbf16, #tpu.memory_space<vmem>>, %arg2: memref<256x128xbf16, #tpu.memory_space<vmem>>, %arg3: memref<1x128xf32, #tpu.memory_space<vmem>>, %arg4: memref<128x128xbf16, #tpu.memory_space<vmem>>, %arg5: memref<1x128xf32, #tpu.memory_space<vmem>>, %arg6: memref<128x128xbf16, #tpu.memory_space<vmem>>, %arg7: memref<1x128xf32, #tpu.memory_space<vmem>>, %arg8: memref<128x256xbf16, #tpu.memory_space<vmem>>, %arg9: memref<1x256xf32, #tpu.memory_space<vmem>>, %arg10: memref<24x256xbf16, #tpu.memory_space<vmem>>) attributes {dimension_semantics = [#tpu.dimension_semantics<parallel>], iteration_bounds = array<i64: 1>, scalar_prefetch = 0 : i64, scratch_operands = 0 : i64, tpu.core_type = #tpu.core_type<tc>, window_params = [{transform_indices = @transform_0, window_bounds = array<i64: 24, 256>}, {pipeline_mode = #tpu.pipeline_mode<synchronous>, transform_indices = @transform_1, window_bounds = array<i64: 256, 128>}, {pipeline_mode = #tpu.pipeline_mode<synchronous>, transform_indices = @transform_2, window_bounds = array<i64: 1, 128>}, {pipeline_mode = #tpu.pipeline_mode<synchronous>, transform_indices = @transform_3, window_bounds = array<i64: 128, 128>}, {pipeline_mode = #tpu.pipeline_mode<synchronous>, transform_indices = @transform_4, window_bounds = array<i64: 1, 128>}, {pipeline_mode = #tpu.pipeline_mode<synchronous>, transform_indices = @transform_5, window_bounds = array<i64: 128, 128>}, {pipeline_mode = #tpu.pipeline_mode<synchronous>, transform_indices = @transform_6, window_bounds = array<i64: 1, 128>}, {pipeline_mode = #tpu.pipeline_mode<synchronous>, transform_indices = @transform_7, window_bounds = array<i64: 128, 256>}, {pipeline_mode = #tpu.pipeline_mode<synchronous>, transform_indices = @transform_8, window_bounds = array<i64: 1, 256>}, {transform_indices = @transform_9, window_bounds = array<i64: 24, 256>}]} {
    %c0 = arith.constant 0 : index
    %c0_0 = arith.constant 0 : index
    %0 = vector.load %arg1[%c0, %c0_0] : memref<24x256xbf16, #tpu.memory_space<vmem>>, vector<24x256xbf16>
    %c0_1 = arith.constant 0 : index
    %c0_2 = arith.constant 0 : index
    %1 = vector.load %arg2[%c0_1, %c0_2] : memref<256x128xbf16, #tpu.memory_space<vmem>>, vector<256x128xbf16>
    %cst = arith.constant dense<0.000000e+00> : vector<24x128xf32>
    %2 = tpu.matmul %0, %1, %cst {dimension_numbers = #tpu.dot_dimension_numbers<[1], [0], [0], [1], [0, 0, 1, 1], [], []>} : vector<24x256xbf16>, vector<256x128xbf16>, vector<24x128xf32> -> vector<24x128xf32>
    %c0_3 = arith.constant 0 : index
    %c0_4 = arith.constant 0 : index
    %3 = vector.load %arg3[%c0_3, %c0_4] : memref<1x128xf32, #tpu.memory_space<vmem>>, vector<1x128xf32>
    %4 = vector.broadcast %3 : vector<1x128xf32> to vector<24x128xf32>
    %5 = arith.addf %2, %4 : vector<24x128xf32>
    %cst_5 = arith.constant 0.000000e+00 : f32
    %6 = vector.broadcast %cst_5 : f32 to vector<24x128xf32>
    %7 = arith.maximumf %5, %6 : vector<24x128xf32>
    %8 = arith.truncf %7 : vector<24x128xf32> to vector<24x128xbf16>
    %c0_6 = arith.constant 0 : index
    %c0_7 = arith.constant 0 : index
    %9 = vector.load %arg4[%c0_6, %c0_7] : memref<128x128xbf16, #tpu.memory_space<vmem>>, vector<128x128xbf16>
    %cst_8 = arith.constant dense<0.000000e+00> : vector<24x128xf32>
    %10 = tpu.matmul %8, %9, %cst_8 {dimension_numbers = #tpu.dot_dimension_numbers<[1], [0], [0], [1], [0, 0, 1, 1], [], []>} : vector<24x128xbf16>, vector<128x128xbf16>, vector<24x128xf32> -> vector<24x128xf32>
    %c0_9 = arith.constant 0 : index
    %c0_10 = arith.constant 0 : index
    %11 = vector.load %arg5[%c0_9, %c0_10] : memref<1x128xf32, #tpu.memory_space<vmem>>, vector<1x128xf32>
    %12 = vector.broadcast %11 : vector<1x128xf32> to vector<24x128xf32>
    %13 = arith.addf %10, %12 : vector<24x128xf32>
    %cst_11 = arith.constant 0.000000e+00 : f32
    %14 = vector.broadcast %cst_11 : f32 to vector<24x128xf32>
    %15 = arith.maximumf %13, %14 : vector<24x128xf32>
    %16 = arith.truncf %15 : vector<24x128xf32> to vector<24x128xbf16>
    %c0_12 = arith.constant 0 : index
    %c0_13 = arith.constant 0 : index
    %17 = vector.load %arg6[%c0_12, %c0_13] : memref<128x128xbf16, #tpu.memory_space<vmem>>, vector<128x128xbf16>
    %cst_14 = arith.constant dense<0.000000e+00> : vector<24x128xf32>
    %18 = tpu.matmul %16, %17, %cst_14 {dimension_numbers = #tpu.dot_dimension_numbers<[1], [0], [0], [1], [0, 0, 1, 1], [], []>} : vector<24x128xbf16>, vector<128x128xbf16>, vector<24x128xf32> -> vector<24x128xf32>
    %c0_15 = arith.constant 0 : index
    %c0_16 = arith.constant 0 : index
    %19 = vector.load %arg7[%c0_15, %c0_16] : memref<1x128xf32, #tpu.memory_space<vmem>>, vector<1x128xf32>
    %20 = vector.broadcast %19 : vector<1x128xf32> to vector<24x128xf32>
    %21 = arith.addf %18, %20 : vector<24x128xf32>
    %cst_17 = arith.constant 0.000000e+00 : f32
    %22 = vector.broadcast %cst_17 : f32 to vector<24x128xf32>
    %23 = arith.maximumf %21, %22 : vector<24x128xf32>
    %24 = arith.truncf %23 : vector<24x128xf32> to vector<24x128xbf16>
    %c0_18 = arith.constant 0 : index
    %c0_19 = arith.constant 0 : index
    %25 = vector.load %arg8[%c0_18, %c0_19] : memref<128x256xbf16, #tpu.memory_space<vmem>>, vector<128x256xbf16>
    %cst_20 = arith.constant dense<0.000000e+00> : vector<24x256xf32>
    %26 = tpu.matmul %24, %25, %cst_20 {dimension_numbers = #tpu.dot_dimension_numbers<[1], [0], [0], [1], [0, 0, 1, 1], [], []>} : vector<24x128xbf16>, vector<128x256xbf16>, vector<24x256xf32> -> vector<24x256xf32>
    %c0_21 = arith.constant 0 : index
    %c0_22 = arith.constant 0 : index
    %27 = vector.load %arg9[%c0_21, %c0_22] : memref<1x256xf32, #tpu.memory_space<vmem>>, vector<1x256xf32>
    %28 = vector.broadcast %27 : vector<1x256xf32> to vector<24x256xf32>
    %29 = arith.addf %26, %28 : vector<24x256xf32>
    %cst_23 = arith.constant 0.000000e+00 : f32
    %30 = vector.broadcast %cst_23 : f32 to vector<24x256xf32>
    %31 = arith.maximumf %29, %30 : vector<24x256xf32>
    %32 = arith.truncf %31 : vector<24x256xf32> to vector<24x256xbf16>
    %c0_24 = arith.constant 0 : index
    %c0_25 = arith.constant 0 : index
    %33 = vector.load %arg10[%c0_24, %c0_25] : memref<24x256xbf16, #tpu.memory_space<vmem>>, vector<24x256xbf16>
    tpu.vector_store %arg10[%c0_24, %c0_25], %32 {strides = array<i32>} : memref<24x256xbf16, #tpu.memory_space<vmem>>, vector<24x256xbf16>,
    return
  }
  func.func @transform_0(%arg0: i32) -> (i32, i32) {
    %c0_i32 = arith.constant 0 : i32
    %c0_i32_0 = arith.constant 0 : i32
    return %arg0, %c0_i32 : i32, i32
  }
  func.func @transform_1(%arg0: i32) -> (i32, i32) {
    %c0_i32 = arith.constant 0 : i32
    %c0_i32_0 = arith.constant 0 : i32
    %c0_i32_1 = arith.constant 0 : i32
    return %c0_i32, %c0_i32_0 : i32, i32
  }
  func.func @transform_2(%arg0: i32) -> (i32, i32) {
    %c0_i32 = arith.constant 0 : i32
    %c0_i32_0 = arith.constant 0 : i32
    %c0_i32_1 = arith.constant 0 : i32
    return %c0_i32, %c0_i32_0 : i32, i32
  }
  func.func @transform_3(%arg0: i32) -> (i32, i32) {
    %c0_i32 = arith.constant 0 : i32
    %c0_i32_0 = arith.constant 0 : i32
    %c0_i32_1 = arith.constant 0 : i32
    return %c0_i32, %c0_i32_0 : i32, i32
  }
  func.func @transform_4(%arg0: i32) -> (i32, i32) {
    %c0_i32 = arith.constant 0 : i32
    %c0_i32_0 = arith.constant 0 : i32
    %c0_i32_1 = arith.constant 0 : i32
    return %c0_i32, %c0_i32_0 : i32, i32
  }
  func.func @transform_5(%arg0: i32) -> (i32, i32) {
    %c0_i32 = arith.constant 0 : i32
    %c0_i32_0 = arith.constant 0 : i32
    %c0_i32_1 = arith.constant 0 : i32
    return %c0_i32, %c0_i32_0 : i32, i32
  }
  func.func @transform_6(%arg0: i32) -> (i32, i32) {
    %c0_i32 = arith.constant 0 : i32
    %c0_i32_0 = arith.constant 0 : i32
    %c0_i32_1 = arith.constant 0 : i32
    return %c0_i32, %c0_i32_0 : i32, i32
  }
  func.func @transform_7(%arg0: i32) -> (i32, i32) {
    %c0_i32 = arith.constant 0 : i32
    %c0_i32_0 = arith.constant 0 : i32
    %c0_i32_1 = arith.constant 0 : i32
    return %c0_i32, %c0_i32_0 : i32, i32
  }
  func.func @transform_8(%arg0: i32) -> (i32, i32) {
    %c0_i32 = arith.constant 0 : i32
    %c0_i32_0 = arith.constant 0 : i32
    %c0_i32_1 = arith.constant 0 : i32
    return %c0_i32, %c0_i32_0 : i32, i32
  }
  func.func @transform_9(%arg0: i32) -> (i32, i32) {
    %c0_i32 = arith.constant 0 : i32
    %c0_i32_0 = arith.constant 0 : i32
    return %arg0, %c0_i32 : i32, i32
  }
}

</mosaic_0001>

<llo_original>
// kernel: tpu_custom_call.1
$region0: #{tpu_custom_call.1}
  #allocation0 [shape = 'u32[]', space=smem, size = 0x4, offset = 0x4, fixed_abs, tag = 'smem constant byte address 0x4 - core index']
  #allocation1 [shape = 'u32[144,128]{1,0:T(1,128)}', space=vmem, size = 0x12000, scoped, tag = 'internal scratch']
  %s0 = inlined_call_operand.hbm [shape: bf16[24,256], index: 0, kind: input, shape index: {}]
  %s1 = inlined_call_operand.hbm [shape: bf16[256,128], index: 1, kind: input, shape index: {}]
  %s2 = inlined_call_operand.vmem [shape: f32[1,128], index: 2, kind: input, shape index: {}]
  %s3 = inlined_call_operand.hbm [shape: bf16[128,128], index: 3, kind: input, shape index: {}]
  %s4 = inlined_call_operand.vmem [shape: f32[1,128], index: 4, kind: input, shape index: {}]
  %s5 = inlined_call_operand.hbm [shape: bf16[128,128], index: 5, kind: input, shape index: {}]
  %s6 = inlined_call_operand.vmem [shape: f32[1,128], index: 6, kind: input, shape index: {}]
  %s7 = inlined_call_operand.hbm [shape: bf16[128,256], index: 7, kind: input, shape index: {}]
  %s8 = inlined_call_operand.vmem [shape: f32[1,256], index: 8, kind: input, shape index: {}]
  %s9 = inlined_call_operand.hbm [shape: bf16[24,256], index: 9, kind: output, shape index: {}]
  %s10 = sld [smem:[#allocation0]]
  $region66: #{tpu_custom_call.1} parent=0
    _
  %s12 = ssub.s32 1, %s10
  %s13 = scalar_select 0, %s12, %s10
  $region1: #{tpu_custom_call.1} parent=0
    #allocation2 [shape = 'u8[12288]{0}', space=vmem, size = 0x3000, scoped, tag = 'input window, operand 0, single buffered']
    #allocation3 [shape = 's32[1]{0}', space=sflag, size = 0x4, scoped, tag = 'scoped memory for tpu_custom_call.1']
    #allocation4 [shape = 's32[1]{0}', space=sflag, size = 0x4, scoped, tag = 'scoped memory for tpu_custom_call.1']
    #allocation5 [shape = 'u8[65536]{0}', space=vmem, size = 0x10000, scoped, tag = 'input window, operand 1, single buffered']
    #allocation6 [shape = 's32[1]{0}', space=sflag, size = 0x4, scoped, tag = 'scoped memory for tpu_custom_call.1']
    #allocation7 [shape = 'u8[32768]{0}', space=vmem, size = 0x8000, scoped, tag = 'input window, operand 3, single buffered']
    #allocation8 [shape = 'u8[32768]{0}', space=vmem, size = 0x8000, scoped, tag = 'input window, operand 5, single buffered']
    #allocation9 [shape = 's32[1]{0}', space=sflag, size = 0x4, scoped, tag = 'scoped memory for tpu_custom_call.1']
    #allocation10 [shape = 'u8[65536]{0}', space=vmem, size = 0x10000, scoped, tag = 'input window, operand 7, single buffered']
    #allocation11 [shape = 'u8[12288]{0}', space=vmem, size = 0x3000, scoped, tag = 'output window, operand 0, single buffered']
    %14 = vsyncpa [#allocation3], 0
    %15 = vsyncpa [#allocation6], 0
    %16 = vsyncpa [#allocation9], 0
    %17 = vsyncpa [#allocation4], 0
    // Predicated region
    $region2: #{tpu_custom_call.1} parent=1 // pred_check
      _
    $region3: #{tpu_custom_call.1} parent=1 // pred_check_branch
      %19 = sbr.rel (0) target = $region5
    $region4: #{tpu_custom_call.1} parent=1 // pred_region
      %s21 = ssub.s32 384, 384
      %22 = vsyncadd [#allocation3], %s21
      %s23 = sshll.u32 [#allocation2], 4
      %s24 = int_to_ptr.vmem [resolvable:$true] %s23
      %29 = dma.hbm_to_vmem [thread:$0]  %s0, 384, %s24, [#allocation3], 128, 128, 8
    $region5: #{tpu_custom_call.1} parent=1 // pred_fallthru
      _
    // Predicated region
    $region6: #{tpu_custom_call.1} parent=1 // pred_check
      _
    $region7: #{tpu_custom_call.1} parent=1 // pred_check_branch
      %31 = sbr.rel (0) target = $region9
    $region8: #{tpu_custom_call.1} parent=1 // pred_region
      %s33 = ssub.s32 2048, 2048
      %34 = vsyncadd [#allocation6], %s33
      %s35 = sshll.u32 [#allocation5], 4
      %s36 = int_to_ptr.vmem [resolvable:$true] %s35
      %41 = dma.hbm_to_vmem [thread:$0]  %s1, 2048, %s36, [#allocation6], 64, 64, 4
    $region9: #{tpu_custom_call.1} parent=1 // pred_fallthru
      _
    // Predicated region
    $region10: #{tpu_custom_call.1} parent=1 // pred_check
      _
    $region11: #{tpu_custom_call.1} parent=1 // pred_check_branch
      %43 = sbr.rel (0) target = $region13
    $region12: #{tpu_custom_call.1} parent=1 // pred_region
      _
    $region13: #{tpu_custom_call.1} parent=1 // pred_fallthru
      _
    // Predicated region
    $region14: #{tpu_custom_call.1} parent=1 // pred_check
      _
    $region15: #{tpu_custom_call.1} parent=1 // pred_check_branch
      %45 = sbr.rel (0) target = $region17
    $region16: #{tpu_custom_call.1} parent=1 // pred_region
      %s47 = ssub.s32 1024, 1024
      %48 = vsyncadd [#allocation6], %s47
      %s49 = sshll.u32 [#allocation7], 4
      %s50 = int_to_ptr.vmem [resolvable:$true] %s49
      %55 = dma.hbm_to_vmem [thread:$0]  %s3, 1024, %s50, [#allocation6], 64, 64, 4
    $region17: #{tpu_custom_call.1} parent=1 // pred_fallthru
      _
    // Predicated region
    $region18: #{tpu_custom_call.1} parent=1 // pred_check
      _
    $region19: #{tpu_custom_call.1} parent=1 // pred_check_branch
      %57 = sbr.rel (0) target = $region21
    $region20: #{tpu_custom_call.1} parent=1 // pred_region
      _
    $region21: #{tpu_custom_call.1} parent=1 // pred_fallthru
      _
    // Predicated region
    $region22: #{tpu_custom_call.1} parent=1 // pred_check
      _
    $region23: #{tpu_custom_call.1} parent=1 // pred_check_branch
      %59 = sbr.rel (0) target = $region25
    $region24: #{tpu_custom_call.1} parent=1 // pred_region
      %s61 = ssub.s32 1024, 1024
      %62 = vsyncadd [#allocation9], %s61
      %s63 = sshll.u32 [#allocation8], 4
      %s64 = int_to_ptr.vmem [resolvable:$true] %s63
      %69 = dma.hbm_to_vmem [thread:$0]  %s5, 1024, %s64, [#allocation9], 64, 64, 4
    $region25: #{tpu_custom_call.1} parent=1 // pred_fallthru
      _
    // Predicated region
    $region26: #{tpu_custom_call.1} parent=1 // pred_check
      _
    $region27: #{tpu_custom_call.1} parent=1 // pred_check_branch
      %71 = sbr.rel (0) target = $region29
    $region28: #{tpu_custom_call.1} parent=1 // pred_region
      _
    $region29: #{tpu_custom_call.1} parent=1 // pred_fallthru
      _
    // Predicated region
    $region30: #{tpu_custom_call.1} parent=1 // pred_check
      _
    $region31: #{tpu_custom_call.1} parent=1 // pred_check_branch
      %73 = sbr.rel (0) target = $region33
    $region32: #{tpu_custom_call.1} parent=1 // pred_region
      %s75 = ssub.s32 2048, 2048
      %76 = vsyncadd [#allocation9], %s75
      %s77 = sshll.u32 [#allocation10], 4
      %s78 = int_to_ptr.vmem [resolvable:$true] %s77
      %83 = dma.hbm_to_vmem [thread:$0]  %s7, 2048, %s78, [#allocation9], 128, 128, 8
    $region33: #{tpu_custom_call.1} parent=1 // pred_fallthru
      _
    // Predicated region
    $region34: #{tpu_custom_call.1} parent=1 // pred_check
      _
    $region35: #{tpu_custom_call.1} parent=1 // pred_check_branch
      %85 = sbr.rel (0) target = $region37
    $region36: #{tpu_custom_call.1} parent=1 // pred_region
      _
    $region37: #{tpu_custom_call.1} parent=1 // pred_fallthru
      _
    // Predicated region
    $region38: #{tpu_custom_call.1} parent=1 // pred_check
      _
    $region39: #{tpu_custom_call.1} parent=1 // pred_check_branch
      %87 = sbr.rel (0) target = $region41
    $region40: #{tpu_custom_call.1} parent=1 // pred_region
      %88 = dma.done [#allocation3], 384
    $region41: #{tpu_custom_call.1} parent=1 // pred_fallthru
      _
    // Predicated region
    $region42: #{tpu_custom_call.1} parent=1 // pred_check
      _
    $region43: #{tpu_custom_call.1} parent=1 // pred_check_branch
      %90 = sbr.rel (0) target = $region45
    $region44: #{tpu_custom_call.1} parent=1 // pred_region
      %91 = dma.done [#allocation6], 2048
    $region45: #{tpu_custom_call.1} parent=1 // pred_fallthru
      _
    // Predicated region
    $region46: #{tpu_custom_call.1} parent=1 // pred_check
      _
    $region47: #{tpu_custom_call.1} parent=1 // pred_check_branch
      %93 = sbr.rel (0) target = $region49
    $region48: #{tpu_custom_call.1} parent=1 // pred_region
      %94 = dma.done [#allocation6], 1024
    $region49: #{tpu_custom_call.1} parent=1 // pred_fallthru
      _
    // Predicated region
    $region50: #{tpu_custom_call.1} parent=1 // pred_check
      _
    $region51: #{tpu_custom_call.1} parent=1 // pred_check_branch
      %96 = sbr.rel (0) target = $region53
    $region52: #{tpu_custom_call.1} parent=1 // pred_region
      %97 = dma.done [#allocation9], 1024
    $region53: #{tpu_custom_call.1} parent=1 // pred_fallthru
      _
    // Predicated region
    $region54: #{tpu_custom_call.1} parent=1 // pred_check
      _
    $region55: #{tpu_custom_call.1} parent=1 // pred_check_branch
      %99 = sbr.rel (0) target = $region57
    $region56: #{tpu_custom_call.1} parent=1 // pred_region
      %100 = dma.done [#allocation9], 2048
    $region57: #{tpu_custom_call.1} parent=1 // pred_fallthru
      _
    %v102 = vld [vmem:[#allocation2] sm:$0xff]
    %v103 = vld [vmem:[#allocation2 + $0x8] sm:$0xff]
    %v104 = vld [vmem:[#allocation2 + $0x10] sm:$0xff]
    %v105 = vld [vmem:[#allocation5] sm:$0xf]
    %v106 = vld [vmem:[#allocation5 + $0x4] sm:$0xf]
    %v107 = vld [vmem:[#allocation5 + $0x8] sm:$0xf]
    %v108 = vld [vmem:[#allocation5 + $0xc] sm:$0xf]
    %v109 = vld [vmem:[#allocation5 + $0x10] sm:$0xf]
    %v110 = vld [vmem:[#allocation5 + $0x14] sm:$0xf]
    %v111 = vld [vmem:[#allocation5 + $0x18] sm:$0xf]
    %v112 = vld [vmem:[#allocation5 + $0x1c] sm:$0xf]
    %v113 = vld [vmem:[#allocation5 + $0x20] sm:$0xf]
    %v114 = vld [vmem:[#allocation5 + $0x24] sm:$0xf]
    %v115 = vld [vmem:[#allocation5 + $0x28] sm:$0xf]
    %v116 = vld [vmem:[#allocation5 + $0x2c] sm:$0xf]
    %v117 = vld [vmem:[#allocation5 + $0x30] sm:$0xf]
    %v118 = vld [vmem:[#allocation5 + $0x34] sm:$0xf]
    %v119 = vld [vmem:[#allocation5 + $0x38] sm:$0xf]
    %v120 = vld [vmem:[#allocation5 + $0x3c] sm:$0xf]
    %v121 = vld [vmem:[#allocation5 + $0x40] sm:$0xf]
    %v122 = vld [vmem:[#allocation5 + $0x44] sm:$0xf]
    %v123 = vld [vmem:[#allocation5 + $0x48] sm:$0xf]
    %v124 = vld [vmem:[#allocation5 + $0x4c] sm:$0xf]
    %v125 = vld [vmem:[#allocation5 + $0x50] sm:$0xf]
    %v126 = vld [vmem:[#allocation5 + $0x54] sm:$0xf]
    %v127 = vld [vmem:[#allocation5 + $0x58] sm:$0xf]
    %v128 = vld [vmem:[#allocation5 + $0x5c] sm:$0xf]
    %v129 = vld [vmem:[#allocation5 + $0x60] sm:$0xf]
    %v130 = vld [vmem:[#allocation5 + $0x64] sm:$0xf]
    %v131 = vld [vmem:[#allocation5 + $0x68] sm:$0xf]
    %v132 = vld [vmem:[#allocation5 + $0x6c] sm:$0xf]
    %v133 = vld [vmem:[#allocation5 + $0x70] sm:$0xf]
    %v134 = vld [vmem:[#allocation5 + $0x74] sm:$0xf]
    %v135 = vld [vmem:[#allocation5 + $0x78] sm:$0xf]
    %v136 = vld [vmem:[#allocation5 + $0x7c] sm:$0xf]
    %v137 = vld [vmem:[%s2] sm:$0x1]
    %v139 = vlaneseq
    %v140 = vshrl.u32 %v139, 7
    %v141 = vsub.s32 0, %v140
    %v142 = vrot.slane %v137, %v141
    %v147 = vunpack.c.l.b16 %v102
    %v148 = vunpack.c.h.b16 %v102
    %v149 = vunpack.c.l.b16 %v103
    %v150 = vunpack.c.h.b16 %v103
    %v151 = vunpack.c.l.b16 %v104
    %v152 = vunpack.c.h.b16 %v104
    %v153 = vpack.c.b16 %v149, %v147
    %v154 = vpack.c.b16 %v150, %v148
    %v155 = vpack.c.b16 %v151, %v151
    %v156 = vpack.c.b16 %v152, %v152
    %v193 = vunpack.c.l.b16 %v105
    %v194 = vunpack.c.l.b16 %v106
    %v195 = vunpack.c.l.b16 %v107
    %v196 = vunpack.c.l.b16 %v108
    %v197 = vunpack.c.l.b16 %v109
    %v198 = vunpack.c.l.b16 %v110
    %v199 = vunpack.c.l.b16 %v111
    %v200 = vunpack.c.l.b16 %v112
    %v201 = vunpack.c.l.b16 %v113
    %v202 = vunpack.c.l.b16 %v114
    %v203 = vunpack.c.l.b16 %v115
    %v204 = vunpack.c.l.b16 %v116
    %v205 = vunpack.c.l.b16 %v117
    %v206 = vunpack.c.l.b16 %v118
    %v207 = vunpack.c.l.b16 %v119
    %v208 = vunpack.c.l.b16 %v120
    %v209 = vunpack.c.l.b16 %v121
    %v210 = vunpack.c.l.b16 %v122
    %v211 = vunpack.c.l.b16 %v123
    %v212 = vunpack.c.l.b16 %v124
    %v213 = vunpack.c.l.b16 %v125
    %v214 = vunpack.c.l.b16 %v126
    %v215 = vunpack.c.l.b16 %v127
    %v216 = vunpack.c.l.b16 %v128
    %v217 = vunpack.c.l.b16 %v129
    %v218 = vunpack.c.l.b16 %v130
    %v219 = vunpack.c.l.b16 %v131
    %v220 = vunpack.c.l.b16 %v132
    %v221 = vunpack.c.l.b16 %v133
    %v222 = vunpack.c.l.b16 %v134
    %v223 = vunpack.c.l.b16 %v135
    %v224 = vunpack.c.l.b16 %v136
    %v225 = vpack.c.b16 %v194, %v193
    %v226 = vpack.c.b16 %v196, %v195
    %v227 = vpack.c.b16 %v198, %v197
    %v228 = vpack.c.b16 %v200, %v199
    %v229 = vpack.c.b16 %v202, %v201
    %v230 = vpack.c.b16 %v204, %v203
    %v231 = vpack.c.b16 %v206, %v205
    %v232 = vpack.c.b16 %v208, %v207
    %v233 = vpack.c.b16 %v210, %v209
    %v234 = vpack.c.b16 %v212, %v211
    %v235 = vpack.c.b16 %v214, %v213
    %v236 = vpack.c.b16 %v216, %v215
    %v237 = vpack.c.b16 %v218, %v217
    %v238 = vpack.c.b16 %v220, %v219
    %v239 = vpack.c.b16 %v222, %v221
    %v240 = vpack.c.b16 %v224, %v223
    %257 = vmatprep.subr.bf16.mxu0 0
    %258 = vmatpush1.bf16.msra.mxu0 %v232
    %259 = vmatprep.subr.bf16.mxu0 0
    %260 = vmatpush1.bf16.msra.mxu0 %v231
    %261 = vmatprep.subr.bf16.mxu0 0
    %262 = vmatpush1.bf16.msra.mxu0 %v230
    %263 = vmatprep.subr.bf16.mxu0 0
    %264 = vmatpush1.bf16.msra.mxu0 %v229
    %265 = vmatprep.subr.bf16.mxu0 0
    %266 = vmatpush1.bf16.msra.mxu0 %v228
    %267 = vmatprep.subr.bf16.mxu0 0
    %268 = vmatpush1.bf16.msra.mxu0 %v227
    %269 = vmatprep.subr.bf16.mxu0 0
    %270 = vmatpush1.bf16.msra.mxu0 %v226
    %271 = vmatprep.subr.bf16.mxu0 0
    %272 = vmatpush1.bf16.msra.mxu0 %v225
    %273 = vmatprep.subr.bf16.mxu0 0
    %274 = vmatpush2.bf16.msra.mxu0 %v240
    %275 = vmatprep.subr.bf16.mxu0 0
    %276 = vmatpush2.bf16.msra.mxu0 %v239
    %277 = vmatprep.subr.bf16.mxu0 0
    %278 = vmatpush2.bf16.msra.mxu0 %v238
    %279 = vmatprep.subr.bf16.mxu0 0
    %280 = vmatpush2.bf16.msra.mxu0 %v237
    %281 = vmatprep.subr.bf16.mxu0 0
    %282 = vmatpush2.bf16.msra.mxu0 %v236
    %283 = vmatprep.subr.bf16.mxu0 0
    %284 = vmatpush2.bf16.msra.mxu0 %v235
    %285 = vmatprep.subr.bf16.mxu0 0
    %286 = vmatpush2.bf16.msra.mxu0 %v234
    %287 = vmatprep.subr.bf16.mxu0 0
    %288 = vmatpush2.bf16.msra.mxu0 %v233
    %289 = vmatprep.mubr.bf16.mxu0 %v154
    %290 = vmatmul.mubr.bf16.gmra.mxu0 %v153
    %v291 = vpop.f32.mrf.mxu0
    %v292 = vadd.f32 %v142, %v291
    %v293 = vpop.f32.mrf.mxu0
    %v294 = vpop.f32.mrf.mxu0
    %v295 = vadd.f32 %v142, %v294
    %v296 = vpop.f32.mrf.mxu0
    %297 = vmatprep.mubr.bf16.mxu0 %v156
    %298 = vmatmul.mubr.bf16.gmra.mxu0 %v155
    %v299 = vpop.f32.mrf.mxu0
    %v300 = vadd.f32 %v142, %v299
    %v301 = vpop.f32.mrf.mxu0
    %v302 = vpop.f32.mrf.mxu0
    %v303 = vpop.f32.mrf.mxu0
    %304 = vdwg.mxu0
    %v305 = vmax.f32 %v292, 0.0
    %v306 = vmax.f32 %v295, 0.0
    %v307 = vmax.f32 %v300, 0.0
    %v308 = vpack.c.bf16 %v306, %v305
    %v309 = vpack.c.bf16 %v307, %v307
    %v310 = vld [vmem:[#allocation7] sm:$0xf]
    %v311 = vld [vmem:[#allocation7 + $0x4] sm:$0xf]
    %v312 = vld [vmem:[#allocation7 + $0x8] sm:$0xf]
    %v313 = vld [vmem:[#allocation7 + $0xc] sm:$0xf]
    %v314 = vld [vmem:[#allocation7 + $0x10] sm:$0xf]
    %v315 = vld [vmem:[#allocation7 + $0x14] sm:$0xf]
    %v316 = vld [vmem:[#allocation7 + $0x18] sm:$0xf]
    %v317 = vld [vmem:[#allocation7 + $0x1c] sm:$0xf]
    %v318 = vld [vmem:[#allocation7 + $0x20] sm:$0xf]
    %v319 = vld [vmem:[#allocation7 + $0x24] sm:$0xf]
    %v320 = vld [vmem:[#allocation7 + $0x28] sm:$0xf]
    %v321 = vld [vmem:[#allocation7 + $0x2c] sm:$0xf]
    %v322 = vld [vmem:[#allocation7 + $0x30] sm:$0xf]
    %v323 = vld [vmem:[#allocation7 + $0x34] sm:$0xf]
    %v324 = vld [vmem:[#allocation7 + $0x38] sm:$0xf]
    %v325 = vld [vmem:[#allocation7 + $0x3c] sm:$0xf]
    %v326 = vld [vmem:[%s4] sm:$0x1]
    %v328 = vlaneseq
    %v329 = vshrl.u32 %v328, 7
    %v330 = vsub.s32 0, %v329
    %v331 = vrot.slane %v326, %v330
    %v349 = vunpack.c.l.b16 %v310
    %v350 = vunpack.c.l.b16 %v311
    %v351 = vunpack.c.l.b16 %v312
    %v352 = vunpack.c.l.b16 %v313
    %v353 = vunpack.c.l.b16 %v314
    %v354 = vunpack.c.l.b16 %v315
    %v355 = vunpack.c.l.b16 %v316
    %v356 = vunpack.c.l.b16 %v317
    %v357 = vunpack.c.l.b16 %v318
    %v358 = vunpack.c.l.b16 %v319
    %v359 = vunpack.c.l.b16 %v320
    %v360 = vunpack.c.l.b16 %v321
    %v361 = vunpack.c.l.b16 %v322
    %v362 = vunpack.c.l.b16 %v323
    %v363 = vunpack.c.l.b16 %v324
    %v364 = vunpack.c.l.b16 %v325
    %v365 = vpack.c.b16 %v350, %v349
    %v366 = vpack.c.b16 %v352, %v351
    %v367 = vpack.c.b16 %v354, %v353
    %v368 = vpack.c.b16 %v356, %v355
    %v369 = vpack.c.b16 %v358, %v357
    %v370 = vpack.c.b16 %v360, %v359
    %v371 = vpack.c.b16 %v362, %v361
    %v372 = vpack.c.b16 %v364, %v363
    %381 = vmatprep.subr.bf16.mxu0 0
    %382 = vmatpush1.bf16.msra.mxu0 %v372
    %383 = vmatprep.subr.bf16.mxu0 0
    %384 = vmatpush1.bf16.msra.mxu0 %v371
    %385 = vmatprep.subr.bf16.mxu0 0
    %386 = vmatpush1.bf16.msra.mxu0 %v370
    %387 = vmatprep.subr.bf16.mxu0 0
    %388 = vmatpush1.bf16.msra.mxu0 %v369
    %389 = vmatprep.subr.bf16.mxu0 0
    %390 = vmatpush1.bf16.msra.mxu0 %v368
    %391 = vmatprep.subr.bf16.mxu0 0
    %392 = vmatpush1.bf16.msra.mxu0 %v367
    %393 = vmatprep.subr.bf16.mxu0 0
    %394 = vmatpush1.bf16.msra.mxu0 %v366
    %395 = vmatprep.subr.bf16.mxu0 0
    %396 = vmatpush1.bf16.msra.mxu0 %v365
    %397 = vmatprep.subr.bf16.mxu0 0
    %398 = vmatpush2.bf16.msra.mxu0 0
    %399 = vmatprep.subr.bf16.mxu0 0
    %400 = vmatpush2.bf16.msra.mxu0 0
    %401 = vmatprep.subr.bf16.mxu0 0
    %402 = vmatpush2.bf16.msra.mxu0 0
    %403 = vmatprep.subr.bf16.mxu0 0
    %404 = vmatpush2.bf16.msra.mxu0 0
    %405 = vmatprep.subr.bf16.mxu0 0
    %406 = vmatpush2.bf16.msra.mxu0 0
    %407 = vmatprep.subr.bf16.mxu0 0
    %408 = vmatpush2.bf16.msra.mxu0 0
    %409 = vmatprep.subr.bf16.mxu0 0
    %410 = vmatpush2.bf16.msra.mxu0 0
    %411 = vmatprep.subr.bf16.mxu0 0
    %412 = vmatpush2.bf16.msra.mxu0 0
    %413 = vmatprep.mubr.bf16.mxu0 0
    %414 = vmatmul.mubr.bf16.gmra.mxu0 %v308
    %v415 = vpop.f32.mrf.mxu0
    %v416 = vadd.f32 %v331, %v415
    %v417 = vpop.f32.mrf.mxu0
    %v418 = vpop.f32.mrf.mxu0
    %v419 = vadd.f32 %v331, %v418
    %v420 = vpop.f32.mrf.mxu0
    %421 = vmatprep.mubr.bf16.mxu0 0
    %422 = vmatmul.mubr.bf16.gmra.mxu0 %v309
    %v423 = vpop.f32.mrf.mxu0
    %v424 = vadd.f32 %v331, %v423
    %v425 = vpop.f32.mrf.mxu0
    %v426 = vpop.f32.mrf.mxu0
    %v427 = vpop.f32.mrf.mxu0
    %428 = vdwg.mxu0
    %v429 = vmax.f32 %v416, 0.0
    %v430 = vmax.f32 %v419, 0.0
    %v431 = vmax.f32 %v424, 0.0
    %v432 = vpack.c.bf16 %v430, %v429
    %v433 = vpack.c.bf16 %v431, %v431
    %v434 = vld [vmem:[#allocation8] sm:$0xf]
    %v435 = vld [vmem:[#allocation8 + $0x4] sm:$0xf]
    %v436 = vld [vmem:[#allocation8 + $0x8] sm:$0xf]
    %v437 = vld [vmem:[#allocation8 + $0xc] sm:$0xf]
    %v438 = vld [vmem:[#allocation8 + $0x10] sm:$0xf]
    %v439 = vld [vmem:[#allocation8 + $0x14] sm:$0xf]
    %v440 = vld [vmem:[#allocation8 + $0x18] sm:$0xf]
    %v441 = vld [vmem:[#allocation8 + $0x1c] sm:$0xf]
    %v442 = vld [vmem:[#allocation8 + $0x20] sm:$0xf]
    %v443 = vld [vmem:[#allocation8 + $0x24] sm:$0xf]
    %v444 = vld [vmem:[#allocation8 + $0x28] sm:$0xf]
    %v445 = vld [vmem:[#allocation8 + $0x2c] sm:$0xf]
    %v446 = vld [vmem:[#allocation8 + $0x30] sm:$0xf]
    %v447 = vld [vmem:[#allocation8 + $0x34] sm:$0xf]
    %v448 = vld [vmem:[#allocation8 + $0x38] sm:$0xf]
    %v449 = vld [vmem:[#allocation8 + $0x3c] sm:$0xf]
    %v450 = vld [vmem:[%s6] sm:$0x1]
    %v452 = vlaneseq
    %v453 = vshrl.u32 %v452, 7
    %v454 = vsub.s32 0, %v453
    %v455 = vrot.slane %v450, %v454
    %v473 = vunpack.c.l.b16 %v434
    %v474 = vunpack.c.l.b16 %v435
    %v475 = vunpack.c.l.b16 %v436
    %v476 = vunpack.c.l.b16 %v437
    %v477 = vunpack.c.l.b16 %v438
    %v478 = vunpack.c.l.b16 %v439
    %v479 = vunpack.c.l.b16 %v440
    %v480 = vunpack.c.l.b16 %v441
    %v481 = vunpack.c.l.b16 %v442
    %v482 = vunpack.c.l.b16 %v443
    %v483 = vunpack.c.l.b16 %v444
    %v484 = vunpack.c.l.b16 %v445
    %v485 = vunpack.c.l.b16 %v446
    %v486 = vunpack.c.l.b16 %v447
    %v487 = vunpack.c.l.b16 %v448
    %v488 = vunpack.c.l.b16 %v449
    %v489 = vpack.c.b16 %v474, %v473
    %v490 = vpack.c.b16 %v476, %v475
    %v491 = vpack.c.b16 %v478, %v477
    %v492 = vpack.c.b16 %v480, %v479
    %v493 = vpack.c.b16 %v482, %v481
    %v494 = vpack.c.b16 %v484, %v483
    %v495 = vpack.c.b16 %v486, %v485
    %v496 = vpack.c.b16 %v488, %v487
    %505 = vmatprep.subr.bf16.mxu0 0
    %506 = vmatpush1.bf16.msra.mxu0 %v496
    %507 = vmatprep.subr.bf16.mxu0 0
    %508 = vmatpush1.bf16.msra.mxu0 %v495
    %509 = vmatprep.subr.bf16.mxu0 0
    %510 = vmatpush1.bf16.msra.mxu0 %v494
    %511 = vmatprep.subr.bf16.mxu0 0
    %512 = vmatpush1.bf16.msra.mxu0 %v493
    %513 = vmatprep.subr.bf16.mxu0 0
    %514 = vmatpush1.bf16.msra.mxu0 %v492
    %515 = vmatprep.subr.bf16.mxu0 0
    %516 = vmatpush1.bf16.msra.mxu0 %v491
    %517 = vmatprep.subr.bf16.mxu0 0
    %518 = vmatpush1.bf16.msra.mxu0 %v490
    %519 = vmatprep.subr.bf16.mxu0 0
    %520 = vmatpush1.bf16.msra.mxu0 %v489
    %521 = vmatprep.subr.bf16.mxu0 0
    %522 = vmatpush2.bf16.msra.mxu0 0
    %523 = vmatprep.subr.bf16.mxu0 0
    %524 = vmatpush2.bf16.msra.mxu0 0
    %525 = vmatprep.subr.bf16.mxu0 0
    %526 = vmatpush2.bf16.msra.mxu0 0
    %527 = vmatprep.subr.bf16.mxu0 0
    %528 = vmatpush2.bf16.msra.mxu0 0
    %529 = vmatprep.subr.bf16.mxu0 0
    %530 = vmatpush2.bf16.msra.mxu0 0
    %531 = vmatprep.subr.bf16.mxu0 0
    %532 = vmatpush2.bf16.msra.mxu0 0
    %533 = vmatprep.subr.bf16.mxu0 0
    %534 = vmatpush2.bf16.msra.mxu0 0
    %535 = vmatprep.subr.bf16.mxu0 0
    %536 = vmatpush2.bf16.msra.mxu0 0
    %537 = vmatprep.mubr.bf16.mxu0 0
    %538 = vmatmul.mubr.bf16.gmra.mxu0 %v432
    %v539 = vpop.f32.mrf.mxu0
    %v540 = vadd.f32 %v455, %v539
    %v541 = vpop.f32.mrf.mxu0
    %v542 = vpop.f32.mrf.mxu0
    %v543 = vadd.f32 %v455, %v542
    %v544 = vpop.f32.mrf.mxu0
    %545 = vmatprep.mubr.bf16.mxu0 0
    %546 = vmatmul.mubr.bf16.gmra.mxu0 %v433
    %v547 = vpop.f32.mrf.mxu0
    %v548 = vadd.f32 %v455, %v547
    %v549 = vpop.f32.mrf.mxu0
    %v550 = vpop.f32.mrf.mxu0
    %v551 = vpop.f32.mrf.mxu0
    %552 = vdwg.mxu0
    %v553 = vmax.f32 %v540, 0.0
    %v554 = vmax.f32 %v543, 0.0
    %v555 = vmax.f32 %v548, 0.0
    %v556 = vpack.c.bf16 %v554, %v553
    %v557 = vpack.c.bf16 %v555, %v555
    %v558 = vld [vmem:[#allocation10] sm:$0xff]
    %v559 = vld [vmem:[#allocation10 + $0x8] sm:$0xff]
    %v560 = vld [vmem:[#allocation10 + $0x10] sm:$0xff]
    %v561 = vld [vmem:[#allocation10 + $0x18] sm:$0xff]
    %v562 = vld [vmem:[#allocation10 + $0x20] sm:$0xff]
    %v563 = vld [vmem:[#allocation10 + $0x28] sm:$0xff]
    %v564 = vld [vmem:[#allocation10 + $0x30] sm:$0xff]
    %v565 = vld [vmem:[#allocation10 + $0x38] sm:$0xff]
    %v566 = vld [vmem:[#allocation10 + $0x40] sm:$0xff]
    %v567 = vld [vmem:[#allocation10 + $0x48] sm:$0xff]
    %v568 = vld [vmem:[#allocation10 + $0x50] sm:$0xff]
    %v569 = vld [vmem:[#allocation10 + $0x58] sm:$0xff]
    %v570 = vld [vmem:[#allocation10 + $0x60] sm:$0xff]
    %v571 = vld [vmem:[#allocation10 + $0x68] sm:$0xff]
    %v572 = vld [vmem:[#allocation10 + $0x70] sm:$0xff]
    %v573 = vld [vmem:[#allocation10 + $0x78] sm:$0xff]
    %v574 = vld [vmem:[%s8] sm:$0x3]
    %v576 = vlaneseq
    %v577 = vshrl.u32 %v576, 7
    %v578 = vsub.s32 0, %v577
    %v579 = vrot.slane %v574, %v578
    %v580 = vlaneseq
    %v581 = vshrl.u32 %v580, 7
    %v582 = vsub.s32 1, %v581
    %v583 = vrot.slane %v574, %v582
    %v602 = vunpack.c.l.b16 %v558
    %v603 = vunpack.c.h.b16 %v558
    %v604 = vunpack.c.l.b16 %v559
    %v605 = vunpack.c.h.b16 %v559
    %v606 = vunpack.c.l.b16 %v560
    %v607 = vunpack.c.h.b16 %v560
    %v608 = vunpack.c.l.b16 %v561
    %v609 = vunpack.c.h.b16 %v561
    %v610 = vunpack.c.l.b16 %v562
    %v611 = vunpack.c.h.b16 %v562
    %v612 = vunpack.c.l.b16 %v563
    %v613 = vunpack.c.h.b16 %v563
    %v614 = vunpack.c.l.b16 %v564
    %v615 = vunpack.c.h.b16 %v564
    %v616 = vunpack.c.l.b16 %v565
    %v617 = vunpack.c.h.b16 %v565
    %v618 = vunpack.c.l.b16 %v566
    %v619 = vunpack.c.h.b16 %v566
    %v620 = vunpack.c.l.b16 %v567
    %v621 = vunpack.c.h.b16 %v567
    %v622 = vunpack.c.l.b16 %v568
    %v623 = vunpack.c.h.b16 %v568
    %v624 = vunpack.c.l.b16 %v569
    %v625 = vunpack.c.h.b16 %v569
    %v626 = vunpack.c.l.b16 %v570
    %v627 = vunpack.c.h.b16 %v570
    %v628 = vunpack.c.l.b16 %v571
    %v629 = vunpack.c.h.b16 %v571
    %v630 = vunpack.c.l.b16 %v572
    %v631 = vunpack.c.h.b16 %v572
    %v632 = vunpack.c.l.b16 %v573
    %v633 = vunpack.c.h.b16 %v573
    %v634 = vpack.c.b16 %v604, %v602
    %v635 = vpack.c.b16 %v605, %v603
    %v636 = vpack.c.b16 %v608, %v606
    %v637 = vpack.c.b16 %v609, %v607
    %v638 = vpack.c.b16 %v612, %v610
    %v639 = vpack.c.b16 %v613, %v611
    %v640 = vpack.c.b16 %v616, %v614
    %v641 = vpack.c.b16 %v617, %v615
    %v642 = vpack.c.b16 %v620, %v618
    %v643 = vpack.c.b16 %v621, %v619
    %v644 = vpack.c.b16 %v624, %v622
    %v645 = vpack.c.b16 %v625, %v623
    %v646 = vpack.c.b16 %v628, %v626
    %v647 = vpack.c.b16 %v629, %v627
    %v648 = vpack.c.b16 %v632, %v630
    %v649 = vpack.c.b16 %v633, %v631
    %666 = vmatprep.subr.bf16.mxu0 %v649
    %667 = vmatpush1.bf16.msra.mxu0 %v648
    %668 = vmatprep.subr.bf16.mxu0 %v647
    %669 = vmatpush1.bf16.msra.mxu0 %v646
    %670 = vmatprep.subr.bf16.mxu0 %v645
    %671 = vmatpush1.bf16.msra.mxu0 %v644
    %672 = vmatprep.subr.bf16.mxu0 %v643
    %673 = vmatpush1.bf16.msra.mxu0 %v642
    %674 = vmatprep.subr.bf16.mxu0 %v641
    %675 = vmatpush1.bf16.msra.mxu0 %v640
    %676 = vmatprep.subr.bf16.mxu0 %v639
    %677 = vmatpush1.bf16.msra.mxu0 %v638
    %678 = vmatprep.subr.bf16.mxu0 %v637
    %679 = vmatpush1.bf16.msra.mxu0 %v636
    %680 = vmatprep.subr.bf16.mxu0 %v635
    %681 = vmatpush1.bf16.msra.mxu0 %v634
    %682 = vmatprep.subr.bf16.mxu0 0
    %683 = vmatpush2.bf16.msra.mxu0 0
    %684 = vmatprep.subr.bf16.mxu0 0
    %685 = vmatpush2.bf16.msra.mxu0 0
    %686 = vmatprep.subr.bf16.mxu0 0
    %687 = vmatpush2.bf16.msra.mxu0 0
    %688 = vmatprep.subr.bf16.mxu0 0
    %689 = vmatpush2.bf16.msra.mxu0 0
    %690 = vmatprep.subr.bf16.mxu0 0
    %691 = vmatpush2.bf16.msra.mxu0 0
    %692 = vmatprep.subr.bf16.mxu0 0
    %693 = vmatpush2.bf16.msra.mxu0 0
    %694 = vmatprep.subr.bf16.mxu0 0
    %695 = vmatpush2.bf16.msra.mxu0 0
    %696 = vmatprep.subr.bf16.mxu0 0
    %697 = vmatpush2.bf16.msra.mxu0 0
    %698 = vmatprep.mubr.bf16.mxu0 0
    %699 = vmatmul.mubr.bf16.gmra.mxu0 %v556
    %v700 = vpop.f32.mrf.mxu0
    %v701 = vadd.f32 %v579, %v700
    %v702 = vpop.f32.mrf.mxu0
    %v703 = vadd.f32 %v583, %v702
    %v704 = vpop.f32.mrf.mxu0
    %v705 = vadd.f32 %v579, %v704
    %v706 = vpop.f32.mrf.mxu0
    %v707 = vadd.f32 %v583, %v706
    %708 = vmatprep.mubr.bf16.mxu0 0
    %709 = vmatmul.mubr.bf16.gmra.mxu0 %v557
    %v710 = vpop.f32.mrf.mxu0
    %v711 = vadd.f32 %v579, %v710
    %v712 = vpop.f32.mrf.mxu0
    %v713 = vadd.f32 %v583, %v712
    %v714 = vpop.f32.mrf.mxu0
    %v715 = vpop.f32.mrf.mxu0
    %716 = vdwg.mxu0
    %v717 = vmax.f32 %v701, 0.0
    %v718 = vmax.f32 %v703, 0.0
    %v719 = vmax.f32 %v705, 0.0
    %v720 = vmax.f32 %v707, 0.0
    %v721 = vmax.f32 %v711, 0.0
    %v722 = vmax.f32 %v713, 0.0
    %v723 = vpack.c.bf16 %v719, %v717
    %v724 = vpack.c.bf16 %v720, %v718
    %v725 = vpack.c.bf16 %v721, %v721
    %v726 = vpack.c.bf16 %v722, %v722
    %v731 = vunpack.c.l.b16 %v723
    %v732 = vunpack.c.l.b16 %v724
    %v733 = vunpack.c.h.b16 %v723
    %v734 = vunpack.c.h.b16 %v724
    %v735 = vunpack.c.l.b16 %v725
    %v736 = vunpack.c.l.b16 %v726
    %v737 = vpack.c.b16 %v732, %v731
    %v738 = vpack.c.b16 %v734, %v733
    %v739 = vpack.c.b16 %v736, %v735
    %743 = vst [vmem:[#allocation11] sm:$0xff] %v737
    %744 = vst [vmem:[#allocation11 + $0x8] sm:$0xff] %v738
    %745 = vst [vmem:[#allocation11 + $0x10] sm:$0xff] %v739
    // Predicated region
    $region58: #{tpu_custom_call.1} parent=1 // pred_check
      _
    $region59: #{tpu_custom_call.1} parent=1 // pred_check_branch
      %747 = sbr.rel (0) target = $region61
    $region60: #{tpu_custom_call.1} parent=1 // pred_region
      %s749 = ssub.s32 384, 384
      %750 = vsyncadd [#allocation4], %s749
      %s751 = sshll.u32 [#allocation11], 4
      %s752 = int_to_ptr.vmem [resolvable:$true] %s751
      %757 = dma.vmem_to_hbm [thread:$0]  %s752, 384, %s9, [#allocation4], 128, 128, 8
    $region61: #{tpu_custom_call.1} parent=1 // pred_fallthru
      _
    // Predicated region
    $region62: #{tpu_custom_call.1} parent=1 // pred_check
      _
    $region63: #{tpu_custom_call.1} parent=1 // pred_check_branch
      %759 = sbr.rel (0) target = $region65
    $region64: #{tpu_custom_call.1} parent=1 // pred_region
      %760 = dma.done [#allocation4], 384
    $region65: #{tpu_custom_call.1} parent=1 // pred_fallthru
      _
    %761 = vsyncpa [#allocation3], 1
    %762 = vsyncpa [#allocation6], 1
    %763 = vsyncpa [#allocation9], 1
    %764 = vsyncpa [#allocation4], 1

// kernel: tpu_custom_call.1
$region0: #{tpu_custom_call.1}
  #allocation0 [shape = 'u32[]', space=smem, size = 0x4, offset = 0x4, fixed_abs, tag = 'smem constant byte address 0x4 - core index']
  #allocation1 [shape = 'u32[144,128]{1,0:T(1,128)}', space=vmem, size = 0x12000, scoped, tag = 'internal scratch']
  %s0 = inlined_call_operand.hbm [shape: bf16[24,256], index: 0, kind: input, shape index: {}]
  %s1 = inlined_call_operand.hbm [shape: bf16[256,128], index: 1, kind: input, shape index: {}]
  %s2 = inlined_call_operand.vmem [shape: f32[1,128], index: 2, kind: input, shape index: {}]
  %s3 = inlined_call_operand.hbm [shape: bf16[128,128], index: 3, kind: input, shape index: {}]
  %s4 = inlined_call_operand.vmem [shape: f32[1,128], index: 4, kind: input, shape index: {}]
  %s5 = inlined_call_operand.hbm [shape: bf16[128,128], index: 5, kind: input, shape index: {}]
  %s6 = inlined_call_operand.vmem [shape: f32[1,128], index: 6, kind: input, shape index: {}]
  %s7 = inlined_call_operand.hbm [shape: bf16[128,256], index: 7, kind: input, shape index: {}]
  %s8 = inlined_call_operand.vmem [shape: f32[1,256], index: 8, kind: input, shape index: {}]
  %s9 = inlined_call_operand.hbm [shape: bf16[24,256], index: 9, kind: output, shape index: {}]
  %s10 = sld [smem:[#allocation0]]
  $region66: #{tpu_custom_call.1} parent=0
    _
  %s12 = ssub.s32 1, %s10
  %s13 = scalar_select 0, %s12, %s10
  $region1: #{tpu_custom_call.1} parent=0
    #allocation2 [shape = 'u8[12288]{0}', space=vmem, size = 0x3000, scoped, tag = 'input window, operand 0, single buffered']
    #allocation3 [shape = 's32[1]{0}', space=sflag, size = 0x4, scoped, tag = 'scoped memory for tpu_custom_call.1']
    #allocation4 [shape = 's32[1]{0}', space=sflag, size = 0x4, scoped, tag = 'scoped memory for tpu_custom_call.1']
    #allocation5 [shape = 'u8[65536]{0}', space=vmem, size = 0x10000, scoped, tag = 'input window, operand 1, single buffered']
    #allocation6 [shape = 's32[1]{0}', space=sflag, size = 0x4, scoped, tag = 'scoped memory for tpu_custom_call.1']
    #allocation7 [shape = 'u8[32768]{0}', space=vmem, size = 0x8000, scoped, tag = 'input window, operand 3, single buffered']
    #allocation8 [shape = 'u8[32768]{0}', space=vmem, size = 0x8000, scoped, tag = 'input window, operand 5, single buffered']
    #allocation9 [shape = 's32[1]{0}', space=sflag, size = 0x4, scoped, tag = 'scoped memory for tpu_custom_call.1']
    #allocation10 [shape = 'u8[65536]{0}', space=vmem, size = 0x10000, scoped, tag = 'input window, operand 7, single buffered']
    #allocation11 [shape = 'u8[12288]{0}', space=vmem, size = 0x3000, scoped, tag = 'output window, operand 0, single buffered']
    %14 = vsyncpa [#allocation3], 0
    %15 = vsyncpa [#allocation6], 0
    %16 = vsyncpa [#allocation9], 0
    %17 = vsyncpa [#allocation4], 0
    // Predicated region
    $region2: #{tpu_custom_call.1} parent=1 // pred_check
      _
    $region3: #{tpu_custom_call.1} parent=1 // pred_check_branch
      %19 = sbr.rel (0) target = $region5
    $region4: #{tpu_custom_call.1} parent=1 // pred_region
      %s21 = ssub.s32 384, 384
      %22 = vsyncadd [#allocation3], %s21
      %s23 = sshll.u32 [#allocation2], 4
      %s24 = int_to_ptr.vmem [resolvable:$true] %s23
      %29 = dma.hbm_to_vmem [thread:$0]  %s0, 384, %s24, [#allocation3], 128, 128, 8
    $region5: #{tpu_custom_call.1} parent=1 // pred_fallthru
      _
    // Predicated region
    $region6: #{tpu_custom_call.1} parent=1 // pred_check
      _
    $region7: #{tpu_custom_call.1} parent=1 // pred_check_branch
      %31 = sbr.rel (0) target = $region9
    $region8: #{tpu_custom_call.1} parent=1 // pred_region
      %s33 = ssub.s32 2048, 2048
      %34 = vsyncadd [#allocation6], %s33
      %s35 = sshll.u32 [#allocation5], 4
      %s36 = int_to_ptr.vmem [resolvable:$true] %s35
      %41 = dma.hbm_to_vmem [thread:$0]  %s1, 2048, %s36, [#allocation6], 64, 64, 4
    $region9: #{tpu_custom_call.1} parent=1 // pred_fallthru
      _
    // Predicated region
    $region10: #{tpu_custom_call.1} parent=1 // pred_check
      _
    $region11: #{tpu_custom_call.1} parent=1 // pred_check_branch
      %43 = sbr.rel (0) target = $region13
    $region12: #{tpu_custom_call.1} parent=1 // pred_region
      _
    $region13: #{tpu_custom_call.1} parent=1 // pred_fallthru
      _
    // Predicated region
    $region14: #{tpu_custom_call.1} parent=1 // pred_check
      _
    $region15: #{tpu_custom_call.1} parent=1 // pred_check_branch
      %45 = sbr.rel (0) target = $region17
    $region16: #{tpu_custom_call.1} parent=1 // pred_region
      %s47 = ssub.s32 1024, 1024
      %48 = vsyncadd [#allocation6], %s47
      %s49 = sshll.u32 [#allocation7], 4
      %s50 = int_to_ptr.vmem [resolvable:$true] %s49
      %55 = dma.hbm_to_vmem [thread:$0]  %s3, 1024, %s50, [#allocation6], 64, 64, 4
    $region17: #{tpu_custom_call.1} parent=1 // pred_fallthru
      _
    // Predicated region
    $region18: #{tpu_custom_call.1} parent=1 // pred_check
      _
    $region19: #{tpu_custom_call.1} parent=1 // pred_check_branch
      %57 = sbr.rel (0) target = $region21
    $region20: #{tpu_custom_call.1} parent=1 // pred_region
      _
    $region21: #{tpu_custom_call.1} parent=1 // pred_fallthru
      _
    // Predicated region
    $region22: #{tpu_custom_call.1} parent=1 // pred_check
      _
    $region23: #{tpu_custom_call.1} parent=1 // pred_check_branch
      %59 = sbr.rel (0) target = $region25
    $region24: #{tpu_custom_call.1} parent=1 // pred_region
      %s61 = ssub.s32 1024, 1024
      %62 = vsyncadd [#allocation9], %s61
      %s63 = sshll.u32 [#allocation8], 4
      %s64 = int_to_ptr.vmem [resolvable:$true] %s63
      %69 = dma.hbm_to_vmem [thread:$0]  %s5, 1024, %s64, [#allocation9], 64, 64, 4
    $region25: #{tpu_custom_call.1} parent=1 // pred_fallthru
      _
    // Predicated region
    $region26: #{tpu_custom_call.1} parent=1 // pred_check
      _
    $region27: #{tpu_custom_call.1} parent=1 // pred_check_branch
      %71 = sbr.rel (0) target = $region29
    $region28: #{tpu_custom_call.1} parent=1 // pred_region
      _
    $region29: #{tpu_custom_call.1} parent=1 // pred_fallthru
      _
    // Predicated region
    $region30: #{tpu_custom_call.1} parent=1 // pred_check
      _
    $region31: #{tpu_custom_call.1} parent=1 // pred_check_branch
      %73 = sbr.rel (0) target = $region33
    $region32: #{tpu_custom_call.1} parent=1 // pred_region
      %s75 = ssub.s32 2048, 2048
      %76 = vsyncadd [#allocation9], %s75
      %s77 = sshll.u32 [#allocation10], 4
      %s78 = int_to_ptr.vmem [resolvable:$true] %s77
      %83 = dma.hbm_to_vmem [thread:$0]  %s7, 2048, %s78, [#allocation9], 128, 128, 8
    $region33: #{tpu_custom_call.1} parent=1 // pred_fallthru
      _
    // Predicated region
    $region34: #{tpu_custom_call.1} parent=1 // pred_check
      _
    $region35: #{tpu_custom_call.1} parent=1 // pred_check_branch
      %85 = sbr.rel (0) target = $region37
    $region36: #{tpu_custom_call.1} parent=1 // pred_region
      _
    $region37: #{tpu_custom_call.1} parent=1 // pred_fallthru
      _
    // Predicated region
    $region38: #{tpu_custom_call.1} parent=1 // pred_check
      _
    $region39: #{tpu_custom_call.1} parent=1 // pred_check_branch
      %87 = sbr.rel (0) target = $region41
    $region40: #{tpu_custom_call.1} parent=1 // pred_region
      %88 = dma.done [#allocation3], 384
    $region41: #{tpu_custom_call.1} parent=1 // pred_fallthru
      _
    // Predicated region
    $region42: #{tpu_custom_call.1} parent=1 // pred_check
      _
    $region43: #{tpu_custom_call.1} parent=1 // pred_check_branch
      %90 = sbr.rel (0) target = $region45
    $region44: #{tpu_custom_call.1} parent=1 // pred_region
      %91 = dma.done [#allocation6], 2048
    $region45: #{tpu_custom_call.1} parent=1 // pred_fallthru
      _
    // Predicated region
    $region46: #{tpu_custom_call.1} parent=1 // pred_check
      _
    $region47: #{tpu_custom_call.1} parent=1 // pred_check_branch
      %93 = sbr.rel (0) target = $region49
    $region48: #{tpu_custom_call.1} parent=1 // pred_region
      %94 = dma.done [#allocation6], 1024
    $region49: #{tpu_custom_call.1} parent=1 // pred_fallthru
      _
    // Predicated region
    $region50: #{tpu_custom_call.1} parent=1 // pred_check
      _
    $region51: #{tpu_custom_call.1} parent=1 // pred_check_branch
      %96 = sbr.rel (0) target = $region53
    $region52: #{tpu_custom_call.1} parent=1 // pred_region
      %97 = dma.done [#allocation9], 1024
    $region53: #{tpu_custom_call.1} parent=1 // pred_fallthru
      _
    // Predicated region
    $region54: #{tpu_custom_call.1} parent=1 // pred_check
      _
    $region55: #{tpu_custom_call.1} parent=1 // pred_check_branch
      %99 = sbr.rel (0) target = $region57
    $region56: #{tpu_custom_call.1} parent=1 // pred_region
      %100 = dma.done [#allocation9], 2048
    $region57: #{tpu_custom_call.1} parent=1 // pred_fallthru
      _
    %v102 = vld [vmem:[#allocation2] sm:$0xff]
    %v103 = vld [vmem:[#allocation2 + $0x8] sm:$0xff]
    %v104 = vld [vmem:[#allocation2 + $0x10] sm:$0xff]
    %v105 = vld [vmem:[#allocation5] sm:$0xf]
    %v106 = vld [vmem:[#allocation5 + $0x4] sm:$0xf]
    %v107 = vld [vmem:[#allocation5 + $0x8] sm:$0xf]
    %v108 = vld [vmem:[#allocation5 + $0xc] sm:$0xf]
    %v109 = vld [vmem:[#allocation5 + $0x10] sm:$0xf]
    %v110 = vld [vmem:[#allocation5 + $0x14] sm:$0xf]
    %v111 = vld [vmem:[#allocation5 + $0x18] sm:$0xf]
    %v112 = vld [vmem:[#allocation5 + $0x1c] sm:$0xf]
    %v113 = vld [vmem:[#allocation5 + $0x20] sm:$0xf]
    %v114 = vld [vmem:[#allocation5 + $0x24] sm:$0xf]
    %v115 = vld [vmem:[#allocation5 + $0x28] sm:$0xf]
    %v116 = vld [vmem:[#allocation5 + $0x2c] sm:$0xf]
    %v117 = vld [vmem:[#allocation5 + $0x30] sm:$0xf]
    %v118 = vld [vmem:[#allocation5 + $0x34] sm:$0xf]
    %v119 = vld [vmem:[#allocation5 + $0x38] sm:$0xf]
    %v120 = vld [vmem:[#allocation5 + $0x3c] sm:$0xf]
    %v121 = vld [vmem:[#allocation5 + $0x40] sm:$0xf]
    %v122 = vld [vmem:[#allocation5 + $0x44] sm:$0xf]
    %v123 = vld [vmem:[#allocation5 + $0x48] sm:$0xf]
    %v124 = vld [vmem:[#allocation5 + $0x4c] sm:$0xf]
    %v125 = vld [vmem:[#allocation5 + $0x50] sm:$0xf]
    %v126 = vld [vmem:[#allocation5 + $0x54] sm:$0xf]
    %v127 = vld [vmem:[#allocation5 + $0x58] sm:$0xf]
    %v128 = vld [vmem:[#allocation5 + $0x5c] sm:$0xf]
    %v129 = vld [vmem:[#allocation5 + $0x60] sm:$0xf]
    %v130 = vld [vmem:[#allocation5 + $0x64] sm:$0xf]
    %v131 = vld [vmem:[#allocation5 + $0x68] sm:$0xf]
    %v132 = vld [vmem:[#allocation5 + $0x6c] sm:$0xf]
    %v133 = vld [vmem:[#allocation5 + $0x70] sm:$0xf]
    %v134 = vld [vmem:[#allocation5 + $0x74] sm:$0xf]
    %v135 = vld [vmem:[#allocation5 + $0x78] sm:$0xf]
    %v136 = vld [vmem:[#allocation5 + $0x7c] sm:$0xf]
    %v137 = vld [vmem:[%s2] sm:$0x1]
    %v139 = vlaneseq
    %v140 = vshrl.u32 %v139, 7
    %v141 = vsub.s32 0, %v140
    %v142 = vrot.slane %v137, %v141
    %v147 = vunpack.c.l.b16 %v102
    %v148 = vunpack.c.h.b16 %v102
    %v149 = vunpack.c.l.b16 %v103
    %v150 = vunpack.c.h.b16 %v103
    %v151 = vunpack.c.l.b16 %v104
    %v152 = vunpack.c.h.b16 %v104
    %v153 = vpack.c.b16 %v149, %v147
    %v154 = vpack.c.b16 %v150, %v148
    %v155 = vpack.c.b16 %v151, %v151
    %v156 = vpack.c.b16 %v152, %v152
    %v193 = vunpack.c.l.b16 %v105
    %v194 = vunpack.c.l.b16 %v106
    %v195 = vunpack.c.l.b16 %v107
    %v196 = vunpack.c.l.b16 %v108
    %v197 = vunpack.c.l.b16 %v109
    %v198 = vunpack.c.l.b16 %v110
    %v199 = vunpack.c.l.b16 %v111
    %v200 = vunpack.c.l.b16 %v112
    %v201 = vunpack.c.l.b16 %v113
    %v202 = vunpack.c.l.b16 %v114
    %v203 = vunpack.c.l.b16 %v115
    %v204 = vunpack.c.l.b16 %v116
    %v205 = vunpack.c.l.b16 %v117
    %v206 = vunpack.c.l.b16 %v118
    %v207 = vunpack.c.l.b16 %v119
    %v208 = vunpack.c.l.b16 %v120
    %v209 = vunpack.c.l.b16 %v121
    %v210 = vunpack.c.l.b16 %v122
    %v211 = vunpack.c.l.b16 %v123
    %v212 = vunpack.c.l.b16 %v124
    %v213 = vunpack.c.l.b16 %v125
    %v214 = vunpack.c.l.b16 %v126
    %v215 = vunpack.c.l.b16 %v127
    %v216 = vunpack.c.l.b16 %v128
    %v217 = vunpack.c.l.b16 %v129
    %v218 = vunpack.c.l.b16 %v130
    %v219 = vunpack.c.l.b16 %v131
    %v220 = vunpack.c.l.b16 %v132
    %v221 = vunpack.c.l.b16 %v133
    %v222 = vunpack.c.l.b16 %v134
    %v223 = vunpack.c.l.b16 %v135
    %v224 = vunpack.c.l.b16 %v136
    %v225 = vpack.c.b16 %v194, %v193
    %v226 = vpack.c.b16 %v196, %v195
    %v227 = vpack.c.b16 %v198, %v197
    %v228 = vpack.c.b16 %v200, %v199
    %v229 = vpack.c.b16 %v202, %v201
    %v230 = vpack.c.b16 %v204, %v203
    %v231 = vpack.c.b16 %v206, %v205
    %v232 = vpack.c.b16 %v208, %v207
    %v233 = vpack.c.b16 %v210, %v209
    %v234 = vpack.c.b16 %v212, %v211
    %v235 = vpack.c.b16 %v214, %v213
    %v236 = vpack.c.b16 %v216, %v215
    %v237 = vpack.c.b16 %v218, %v217
    %v238 = vpack.c.b16 %v220, %v219
    %v239 = vpack.c.b16 %v222, %v221
    %v240 = vpack.c.b16 %v224, %v223
    %257 = vmatprep.subr.bf16.mxu0 0
    %258 = vmatpush1.bf16.msra.mxu0 %v232
    %259 = vmatprep.subr.bf16.mxu0 0
    %260 = vmatpush1.bf16.msra.mxu0 %v231
    %261 = vmatprep.subr.bf16.mxu0 0
    %262 = vmatpush1.bf16.msra.mxu0 %v230
    %263 = vmatprep.subr.bf16.mxu0 0
    %264 = vmatpush1.bf16.msra.mxu0 %v229
    %265 = vmatprep.subr.bf16.mxu0 0
    %266 = vmatpush1.bf16.msra.mxu0 %v228
    %267 = vmatprep.subr.bf16.mxu0 0
    %268 = vmatpush1.bf16.msra.mxu0 %v227
    %269 = vmatprep.subr.bf16.mxu0 0
    %270 = vmatpush1.bf16.msra.mxu0 %v226
    %271 = vmatprep.subr.bf16.mxu0 0
    %272 = vmatpush1.bf16.msra.mxu0 %v225
    %273 = vmatprep.subr.bf16.mxu0 0
    %274 = vmatpush2.bf16.msra.mxu0 %v240
    %275 = vmatprep.subr.bf16.mxu0 0
    %276 = vmatpush2.bf16.msra.mxu0 %v239
    %277 = vmatprep.subr.bf16.mxu0 0
    %278 = vmatpush2.bf16.msra.mxu0 %v238
    %279 = vmatprep.subr.bf16.mxu0 0
    %280 = vmatpush2.bf16.msra.mxu0 %v237
    %281 = vmatprep.subr.bf16.mxu0 0
    %282 = vmatpush2.bf16.msra.mxu0 %v236
    %283 = vmatprep.subr.bf16.mxu0 0
    %284 = vmatpush2.bf16.msra.mxu0 %v235
    %285 = vmatprep.subr.bf16.mxu0 0
    %286 = vmatpush2.bf16.msra.mxu0 %v234
    %287 = vmatprep.subr.bf16.mxu0 0
    %288 = vmatpush2.bf16.msra.mxu0 %v233
    %289 = vmatprep.mubr.bf16.mxu0 %v154
    %290 = vmatmul.mubr.bf16.gmra.mxu0 %v153
    %v291 = vpop.f32.mrf.mxu0
    %v292 = vadd.f32 %v142, %v291
    %v293 = vpop.f32.mrf.mxu0
    %v294 = vpop.f32.mrf.mxu0
    %v295 = vadd.f32 %v142, %v294
    %v296 = vpop.f32.mrf.mxu0
    %297 = vmatprep.mubr.bf16.mxu0 %v156
    %298 = vmatmul.mubr.bf16.gmra.mxu0 %v155
    %v299 = vpop.f32.mrf.mxu0
    %v300 = vadd.f32 %v142, %v299
    %v301 = vpop.f32.mrf.mxu0
    %v302 = vpop.f32.mrf.mxu0
    %v303 = vpop.f32.mrf.mxu0
    %304 = vdwg.mxu0
    %v305 = vmax.f32 %v292, 0.0
    %v306 = vmax.f32 %v295, 0.0
    %v307 = vmax.f32 %v300, 0.0
    %v308 = vpack.c.bf16 %v306, %v305
    %v309 = vpack.c.bf16 %v307, %v307
    %v310 = vld [vmem:[#allocation7] sm:$0xf]
    %v311 = vld [vmem:[#allocation7 + $0x4] sm:$0xf]
    %v312 = vld [vmem:[#allocation7 + $0x8] sm:$0xf]
    %v313 = vld [vmem:[#allocation7 + $0xc] sm:$0xf]
    %v314 = vld [vmem:[#allocation7 + $0x10] sm:$0xf]
    %v315 = vld [vmem:[#allocation7 + $0x14] sm:$0xf]
    %v316 = vld [vmem:[#allocation7 + $0x18] sm:$0xf]
    %v317 = vld [vmem:[#allocation7 + $0x1c] sm:$0xf]
    %v318 = vld [vmem:[#allocation7 + $0x20] sm:$0xf]
    %v319 = vld [vmem:[#allocation7 + $0x24] sm:$0xf]
    %v320 = vld [vmem:[#allocation7 + $0x28] sm:$0xf]
    %v321 = vld [vmem:[#allocation7 + $0x2c] sm:$0xf]
    %v322 = vld [vmem:[#allocation7 + $0x30] sm:$0xf]
    %v323 = vld [vmem:[#allocation7 + $0x34] sm:$0xf]
    %v324 = vld [vmem:[#allocation7 + $0x38] sm:$0xf]
    %v325 = vld [vmem:[#allocation7 + $0x3c] sm:$0xf]
    %v326 = vld [vmem:[%s4] sm:$0x1]
    %v328 = vlaneseq
    %v329 = vshrl.u32 %v328, 7
    %v330 = vsub.s32 0, %v329
    %v331 = vrot.slane %v326, %v330
    %v349 = vunpack.c.l.b16 %v310
    %v350 = vunpack.c.l.b16 %v311
    %v351 = vunpack.c.l.b16 %v312
    %v352 = vunpack.c.l.b16 %v313
    %v353 = vunpack.c.l.b16 %v314
    %v354 = vunpack.c.l.b16 %v315
    %v355 = vunpack.c.l.b16 %v316
    %v356 = vunpack.c.l.b16 %v317
    %v357 = vunpack.c.l.b16 %v318
    %v358 = vunpack.c.l.b16 %v319
    %v359 = vunpack.c.l.b16 %v320
    %v360 = vunpack.c.l.b16 %v321
    %v361 = vunpack.c.l.b16 %v322
    %v362 = vunpack.c.l.b16 %v323
    %v363 = vunpack.c.l.b16 %v324
    %v364 = vunpack.c.l.b16 %v325
    %v365 = vpack.c.b16 %v350, %v349
    %v366 = vpack.c.b16 %v352, %v351
    %v367 = vpack.c.b16 %v354, %v353
    %v368 = vpack.c.b16 %v356, %v355
    %v369 = vpack.c.b16 %v358, %v357
    %v370 = vpack.c.b16 %v360, %v359
    %v371 = vpack.c.b16 %v362, %v361
    %v372 = vpack.c.b16 %v364, %v363
    %381 = vmatprep.subr.bf16.mxu0 0
    %382 = vmatpush1.bf16.msra.mxu0 %v372
    %383 = vmatprep.subr.bf16.mxu0 0
    %384 = vmatpush1.bf16.msra.mxu0 %v371
    %385 = vmatprep.subr.bf16.mxu0 0
    %386 = vmatpush1.bf16.msra.mxu0 %v370
    %387 = vmatprep.subr.bf16.mxu0 0
    %388 = vmatpush1.bf16.msra.mxu0 %v369
    %389 = vmatprep.subr.bf16.mxu0 0
    %390 = vmatpush1.bf16.msra.mxu0 %v368
    %391 = vmatprep.subr.bf16.mxu0 0
    %392 = vmatpush1.bf16.msra.mxu0 %v367
    %393 = vmatprep.subr.bf16.mxu0 0
    %394 = vmatpush1.bf16.msra.mxu0 %v366
    %395 = vmatprep.subr.bf16.mxu0 0
    %396 = vmatpush1.bf16.msra.mxu0 %v365
    %397 = vmatprep.subr.bf16.mxu0 0
    %398 = vmatpush2.bf16.msra.mxu0 0
    %399 = vmatprep.subr.bf16.mxu0 0
    %400 = vmatpush2.bf16.msra.mxu0 0
    %401 = vmatprep.subr.bf16.mxu0 0
    %402 = vmatpush2.bf16.msra.mxu0 0
    %403 = vmatprep.subr.bf16.mxu0 0
    %404 = vmatpush2.bf16.msra.mxu0 0
    %405 = vmatprep.subr.bf16.mxu0 0
    %406 = vmatpush2.bf16.msra.mxu0 0
    %407 = vmatprep.subr.bf16.mxu0 0
    %408 = vmatpush2.bf16.msra.mxu0 0
    %409 = vmatprep.subr.bf16.mxu0 0
    %410 = vmatpush2.bf16.msra.mxu0 0
    %411 = vmatprep.subr.bf16.mxu0 0
    %412 = vmatpush2.bf16.msra.mxu0 0
    %413 = vmatprep.mubr.bf16.mxu0 0
    %414 = vmatmul.mubr.bf16.gmra.mxu0 %v308
    %v415 = vpop.f32.mrf.mxu0
    %v416 = vadd.f32 %v331, %v415
    %v417 = vpop.f32.mrf.mxu0
    %v418 = vpop.f32.mrf.mxu0
    %v419 = vadd.f32 %v331, %v418
    %v420 = vpop.f32.mrf.mxu0
    %421 = vmatprep.mubr.bf16.mxu0 0
    %422 = vmatmul.mubr.bf16.gmra.mxu0 %v309
    %v423 = vpop.f32.mrf.mxu0
    %v424 = vadd.f32 %v331, %v423
    %v425 = vpop.f32.mrf.mxu0
    %v426 = vpop.f32.mrf.mxu0
    %v427 = vpop.f32.mrf.mxu0
    %428 = vdwg.mxu0
    %v429 = vmax.f32 %v416, 0.0
    %v430 = vmax.f32 %v419, 0.0
    %v431 = vmax.f32 %v424, 0.0
    %v432 = vpack.c.bf16 %v430, %v429
    %v433 = vpack.c.bf16 %v431, %v431
    %v434 = vld [vmem:[#allocation8] sm:$0xf]
    %v435 = vld [vmem:[#allocation8 + $0x4] sm:$0xf]
    %v436 = vld [vmem:[#allocation8 + $0x8] sm:$0xf]
    %v437 = vld [vmem:[#allocation8 + $0xc] sm:$0xf]
    %v438 = vld [vmem:[#allocation8 + $0x10] sm:$0xf]
    %v439 = vld [vmem:[#allocation8 + $0x14] sm:$0xf]
    %v440 = vld [vmem:[#allocation8 + $0x18] sm:$0xf]
    %v441 = vld [vmem:[#allocation8 + $0x1c] sm:$0xf]
    %v442 = vld [vmem:[#allocation8 + $0x20] sm:$0xf]
    %v443 = vld [vmem:[#allocation8 + $0x24] sm:$0xf]
    %v444 = vld [vmem:[#allocation8 + $0x28] sm:$0xf]
    %v445 = vld [vmem:[#allocation8 + $0x2c] sm:$0xf]
    %v446 = vld [vmem:[#allocation8 + $0x30] sm:$0xf]
    %v447 = vld [vmem:[#allocation8 + $0x34] sm:$0xf]
    %v448 = vld [vmem:[#allocation8 + $0x38] sm:$0xf]
    %v449 = vld [vmem:[#allocation8 + $0x3c] sm:$0xf]
    %v450 = vld [vmem:[%s6] sm:$0x1]
    %v452 = vlaneseq
    %v453 = vshrl.u32 %v452, 7
    %v454 = vsub.s32 0, %v453
    %v455 = vrot.slane %v450, %v454
    %v473 = vunpack.c.l.b16 %v434
    %v474 = vunpack.c.l.b16 %v435
    %v475 = vunpack.c.l.b16 %v436
    %v476 = vunpack.c.l.b16 %v437
    %v477 = vunpack.c.l.b16 %v438
    %v478 = vunpack.c.l.b16 %v439
    %v479 = vunpack.c.l.b16 %v440
    %v480 = vunpack.c.l.b16 %v441
    %v481 = vunpack.c.l.b16 %v442
    %v482 = vunpack.c.l.b16 %v443
    %v483 = vunpack.c.l.b16 %v444
    %v484 = vunpack.c.l.b16 %v445
    %v485 = vunpack.c.l.b16 %v446
    %v486 = vunpack.c.l.b16 %v447
    %v487 = vunpack.c.l.b16 %v448
    %v488 = vunpack.c.l.b16 %v449
    %v489 = vpack.c.b16 %v474, %v473
    %v490 = vpack.c.b16 %v476, %v475
    %v491 = vpack.c.b16 %v478, %v477
    %v492 = vpack.c.b16 %v480, %v479
    %v493 = vpack.c.b16 %v482, %v481
    %v494 = vpack.c.b16 %v484, %v483
    %v495 = vpack.c.b16 %v486, %v485
    %v496 = vpack.c.b16 %v488, %v487
    %505 = vmatprep.subr.bf16.mxu0 0
    %506 = vmatpush1.bf16.msra.mxu0 %v496
    %507 = vmatprep.subr.bf16.mxu0 0
    %508 = vmatpush1.bf16.msra.mxu0 %v495
    %509 = vmatprep.subr.bf16.mxu0 0
    %510 = vmatpush1.bf16.msra.mxu0 %v494
    %511 = vmatprep.subr.bf16.mxu0 0
    %512 = vmatpush1.bf16.msra.mxu0 %v493
    %513 = vmatprep.subr.bf16.mxu0 0
    %514 = vmatpush1.bf16.msra.mxu0 %v492
    %515 = vmatprep.subr.bf16.mxu0 0
    %516 = vmatpush1.bf16.msra.mxu0 %v491
    %517 = vmatprep.subr.bf16.mxu0 0
    %518 = vmatpush1.bf16.msra.mxu0 %v490
    %519 = vmatprep.subr.bf16.mxu0 0
    %520 = vmatpush1.bf16.msra.mxu0 %v489
    %521 = vmatprep.subr.bf16.mxu0 0
    %522 = vmatpush2.bf16.msra.mxu0 0
    %523 = vmatprep.subr.bf16.mxu0 0
    %524 = vmatpush2.bf16.msra.mxu0 0
    %525 = vmatprep.subr.bf16.mxu0 0
    %526 = vmatpush2.bf16.msra.mxu0 0
    %527 = vmatprep.subr.bf16.mxu0 0
    %528 = vmatpush2.bf16.msra.mxu0 0
    %529 = vmatprep.subr.bf16.mxu0 0
    %530 = vmatpush2.bf16.msra.mxu0 0
    %531 = vmatprep.subr.bf16.mxu0 0
    %532 = vmatpush2.bf16.msra.mxu0 0
    %533 = vmatprep.subr.bf16.mxu0 0
    %534 = vmatpush2.bf16.msra.mxu0 0
    %535 = vmatprep.subr.bf16.mxu0 0
    %536 = vmatpush2.bf16.msra.mxu0 0
    %537 = vmatprep.mubr.bf16.mxu0 0
    %538 = vmatmul.mubr.bf16.gmra.mxu0 %v432
    %v539 = vpop.f32.mrf.mxu0
    %v540 = vadd.f32 %v455, %v539
    %v541 = vpop.f32.mrf.mxu0
    %v542 = vpop.f32.mrf.mxu0
    %v543 = vadd.f32 %v455, %v542
    %v544 = vpop.f32.mrf.mxu0
    %545 = vmatprep.mubr.bf16.mxu0 0
    %546 = vmatmul.mubr.bf16.gmra.mxu0 %v433
    %v547 = vpop.f32.mrf.mxu0
    %v548 = vadd.f32 %v455, %v547
    %v549 = vpop.f32.mrf.mxu0
    %v550 = vpop.f32.mrf.mxu0
    %v551 = vpop.f32.mrf.mxu0
    %552 = vdwg.mxu0
    %v553 = vmax.f32 %v540, 0.0
    %v554 = vmax.f32 %v543, 0.0
    %v555 = vmax.f32 %v548, 0.0
    %v556 = vpack.c.bf16 %v554, %v553
    %v557 = vpack.c.bf16 %v555, %v555
    %v558 = vld [vmem:[#allocation10] sm:$0xff]
    %v559 = vld [vmem:[#allocation10 + $0x8] sm:$0xff]
    %v560 = vld [vmem:[#allocation10 + $0x10] sm:$0xff]
    %v561 = vld [vmem:[#allocation10 + $0x18] sm:$0xff]
    %v562 = vld [vmem:[#allocation10 + $0x20] sm:$0xff]
    %v563 = vld [vmem:[#allocation10 + $0x28] sm:$0xff]
    %v564 = vld [vmem:[#allocation10 + $0x30] sm:$0xff]
    %v565 = vld [vmem:[#allocation10 + $0x38] sm:$0xff]
    %v566 = vld [vmem:[#allocation10 + $0x40] sm:$0xff]
    %v567 = vld [vmem:[#allocation10 + $0x48] sm:$0xff]
    %v568 = vld [vmem:[#allocation10 + $0x50] sm:$0xff]
    %v569 = vld [vmem:[#allocation10 + $0x58] sm:$0xff]
    %v570 = vld [vmem:[#allocation10 + $0x60] sm:$0xff]
    %v571 = vld [vmem:[#allocation10 + $0x68] sm:$0xff]
    %v572 = vld [vmem:[#allocation10 + $0x70] sm:$0xff]
    %v573 = vld [vmem:[#allocation10 + $0x78] sm:$0xff]
    %v574 = vld [vmem:[%s8] sm:$0x3]
    %v576 = vlaneseq
    %v577 = vshrl.u32 %v576, 7
    %v578 = vsub.s32 0, %v577
    %v579 = vrot.slane %v574, %v578
    %v580 = vlaneseq
    %v581 = vshrl.u32 %v580, 7
    %v582 = vsub.s32 1, %v581
    %v583 = vrot.slane %v574, %v582
    %v602 = vunpack.c.l.b16 %v558
    %v603 = vunpack.c.h.b16 %v558
    %v604 = vunpack.c.l.b16 %v559
    %v605 = vunpack.c.h.b16 %v559
    %v606 = vunpack.c.l.b16 %v560
    %v607 = vunpack.c.h.b16 %v560
    %v608 = vunpack.c.l.b16 %v561
    %v609 = vunpack.c.h.b16 %v561
    %v610 = vunpack.c.l.b16 %v562
    %v611 = vunpack.c.h.b16 %v562
    %v612 = vunpack.c.l.b16 %v563
    %v613 = vunpack.c.h.b16 %v563
    %v614 = vunpack.c.l.b16 %v564
    %v615 = vunpack.c.h.b16 %v564
    %v616 = vunpack.c.l.b16 %v565
    %v617 = vunpack.c.h.b16 %v565
    %v618 = vunpack.c.l.b16 %v566
    %v619 = vunpack.c.h.b16 %v566
    %v620 = vunpack.c.l.b16 %v567
    %v621 = vunpack.c.h.b16 %v567
    %v622 = vunpack.c.l.b16 %v568
    %v623 = vunpack.c.h.b16 %v568
    %v624 = vunpack.c.l.b16 %v569
    %v625 = vunpack.c.h.b16 %v569
    %v626 = vunpack.c.l.b16 %v570
    %v627 = vunpack.c.h.b16 %v570
    %v628 = vunpack.c.l.b16 %v571
    %v629 = vunpack.c.h.b16 %v571
    %v630 = vunpack.c.l.b16 %v572
    %v631 = vunpack.c.h.b16 %v572
    %v632 = vunpack.c.l.b16 %v573
    %v633 = vunpack.c.h.b16 %v573
    %v634 = vpack.c.b16 %v604, %v602
    %v635 = vpack.c.b16 %v605, %v603
    %v636 = vpack.c.b16 %v608, %v606
    %v637 = vpack.c.b16 %v609, %v607
    %v638 = vpack.c.b16 %v612, %v610
    %v639 = vpack.c.b16 %v613, %v611
    %v640 = vpack.c.b16 %v616, %v614
    %v641 = vpack.c.b16 %v617, %v615
    %v642 = vpack.c.b16 %v620, %v618
    %v643 = vpack.c.b16 %v621, %v619
    %v644 = vpack.c.b16 %v624, %v622
    %v645 = vpack.c.b16 %v625, %v623
    %v646 = vpack.c.b16 %v628, %v626
    %v647 = vpack.c.b16 %v629, %v627
    %v648 = vpack.c.b16 %v632, %v630
    %v649 = vpack.c.b16 %v633, %v631
    %666 = vmatprep.subr.bf16.mxu0 %v649
    %667 = vmatpush1.bf16.msra.mxu0 %v648
    %668 = vmatprep.subr.bf16.mxu0 %v647
    %669 = vmatpush1.bf16.msra.mxu0 %v646
    %670 = vmatprep.subr.bf16.mxu0 %v645
    %671 = vmatpush1.bf16.msra.mxu0 %v644
    %672 = vmatprep.subr.bf16.mxu0 %v643
    %673 = vmatpush1.bf16.msra.mxu0 %v642
    %674 = vmatprep.subr.bf16.mxu0 %v641
    %675 = vmatpush1.bf16.msra.mxu0 %v640
    %676 = vmatprep.subr.bf16.mxu0 %v639
    %677 = vmatpush1.bf16.msra.mxu0 %v638
    %678 = vmatprep.subr.bf16.mxu0 %v637
    %679 = vmatpush1.bf16.msra.mxu0 %v636
    %680 = vmatprep.subr.bf16.mxu0 %v635
    %681 = vmatpush1.bf16.msra.mxu0 %v634
    %682 = vmatprep.subr.bf16.mxu0 0
    %683 = vmatpush2.bf16.msra.mxu0 0
    %684 = vmatprep.subr.bf16.mxu0 0
    %685 = vmatpush2.bf16.msra.mxu0 0
    %686 = vmatprep.subr.bf16.mxu0 0
    %687 = vmatpush2.bf16.msra.mxu0 0
    %688 = vmatprep.subr.bf16.mxu0 0
    %689 = vmatpush2.bf16.msra.mxu0 0
    %690 = vmatprep.subr.bf16.mxu0 0
    %691 = vmatpush2.bf16.msra.mxu0 0
    %692 = vmatprep.subr.bf16.mxu0 0
    %693 = vmatpush2.bf16.msra.mxu0 0
    %694 = vmatprep.subr.bf16.mxu0 0
    %695 = vmatpush2.bf16.msra.mxu0 0
    %696 = vmatprep.subr.bf16.mxu0 0
    %697 = vmatpush2.bf16.msra.mxu0 0
    %698 = vmatprep.mubr.bf16.mxu0 0
    %699 = vmatmul.mubr.bf16.gmra.mxu0 %v556
    %v700 = vpop.f32.mrf.mxu0
    %v701 = vadd.f32 %v579, %v700
    %v702 = vpop.f32.mrf.mxu0
    %v703 = vadd.f32 %v583, %v702
    %v704 = vpop.f32.mrf.mxu0
    %v705 = vadd.f32 %v579, %v704
    %v706 = vpop.f32.mrf.mxu0
    %v707 = vadd.f32 %v583, %v706
    %708 = vmatprep.mubr.bf16.mxu0 0
    %709 = vmatmul.mubr.bf16.gmra.mxu0 %v557
    %v710 = vpop.f32.mrf.mxu0
    %v711 = vadd.f32 %v579, %v710
    %v712 = vpop.f32.mrf.mxu0
    %v713 = vadd.f32 %v583, %v712
    %v714 = vpop.f32.mrf.mxu0
    %v715 = vpop.f32.mrf.mxu0
    %716 = vdwg.mxu0
    %v717 = vmax.f32 %v701, 0.0
    %v718 = vmax.f32 %v703, 0.0
    %v719 = vmax.f32 %v705, 0.0
    %v720 = vmax.f32 %v707, 0.0
    %v721 = vmax.f32 %v711, 0.0
    %v722 = vmax.f32 %v713, 0.0
    %v723 = vpack.c.bf16 %v719, %v717
    %v724 = vpack.c.bf16 %v720, %v718
    %v725 = vpack.c.bf16 %v721, %v721
    %v726 = vpack.c.bf16 %v722, %v722
    %v731 = vunpack.c.l.b16 %v723
    %v732 = vunpack.c.l.b16 %v724
    %v733 = vunpack.c.h.b16 %v723
    %v734 = vunpack.c.h.b16 %v724
    %v735 = vunpack.c.l.b16 %v725
    %v736 = vunpack.c.l.b16 %v726
    %v737 = vpack.c.b16 %v732, %v731
    %v738 = vpack.c.b16 %v734, %v733
    %v739 = vpack.c.b16 %v736, %v735
    %743 = vst [vmem:[#allocation11] sm:$0xff] %v737
    %744 = vst [vmem:[#allocation11 + $0x8] sm:$0xff] %v738
    %745 = vst [vmem:[#allocation11 + $0x10] sm:$0xff] %v739
    // Predicated region
    $region58: #{tpu_custom_call.1} parent=1 // pred_check
      _
    $region59: #{tpu_custom_call.1} parent=1 // pred_check_branch
      %747 = sbr.rel (0) target = $region61
    $region60: #{tpu_custom_call.1} parent=1 // pred_region
      %s749 = ssub.s32 384, 384
      %750 = vsyncadd [#allocation4], %s749
      %s751 = sshll.u32 [#allocation11], 4
      %s752 = int_to_ptr.vmem [resolvable:$true] %s751
      %757 = dma.vmem_to_hbm [thread:$0]  %s752, 384, %s9, [#allocation4], 128, 128, 8
    $region61: #{tpu_custom_call.1} parent=1 // pred_fallthru
      _
    // Predicated region
    $region62: #{tpu_custom_call.1} parent=1 // pred_check
      _
    $region63: #{tpu_custom_call.1} parent=1 // pred_check_branch
      %759 = sbr.rel (0) target = $region65
    $region64: #{tpu_custom_call.1} parent=1 // pred_region
      %760 = dma.done [#allocation4], 384
    $region65: #{tpu_custom_call.1} parent=1 // pred_fallthru
      _
    %761 = vsyncpa [#allocation3], 1
    %762 = vsyncpa [#allocation6], 1
    %763 = vsyncpa [#allocation9], 1
    %764 = vsyncpa [#allocation4], 1

</llo_original>
